<compile_context>
chip_gen: v7x
topology: tpu7x:2x2x1
jax: 0.10.0
libtpu: 0.0.40
codegen_flags: <defaults>
</compile_context>

<pallas_src>
import jax
import jax.numpy as jnp
from jax.experimental import pallas as pl
from jax.experimental.pallas import tpu as pltpu
import numpy as np


def _lstm_recurrence_kernel(xproj_ref, whh_ref, hfinal_ref):
    """Full LSTM time recurrence in a single kernel invocation.

    xproj_ref : (T, B_pad, 4*H_pad)  precomputed x @ W_ih^T + (b_ih + b_hh), time-major
    whh_ref   : (H_pad, 4*H_pad)     W_hh^T, gate-blocked & zero padded
    hfinal_ref: (B_pad, H_pad)       hidden state at the last timestep
    """
    T, B, G = xproj_ref.shape
    H = G // 4

    # Weights stay resident in VMEM / vregs for the whole recurrence.
    whh = whh_ref[...]

    def step(t, carry):
        h, c = carry
        # gates = x_proj[t] + h @ W_hh^T   -> (B_pad, 4*H_pad)
        gates = xproj_ref[t] + jnp.dot(h, whh, preferred_element_type=jnp.float32)
        # H is a multiple of 128 -> each slice is whole vregs (lane aligned).
        i = jax.nn.sigmoid(gates[:, 0 * H:1 * H])
        f = jax.nn.sigmoid(gates[:, 1 * H:2 * H])
        g = jnp.tanh(gates[:, 2 * H:3 * H])
        o = jax.nn.sigmoid(gates[:, 3 * H:4 * H])
        c_new = f * c + i * g
        h_new = o * jnp.tanh(c_new)
        return (h_new, c_new)

    h0 = jnp.zeros((B, H), jnp.float32)
    c0 = jnp.zeros((B, H), jnp.float32)
    h_T, _ = jax.lax.fori_loop(0, T, step, (h0, c0), unroll=True)

    hfinal_ref[...] = h_T


def lstm_model_forward(x, params):
    """x: (B, T, I) float32 (batch_first, like PyTorch). Returns (B, 1)."""
    w_ih, w_hh, b_ih, b_hh, fc_w, fc_b = params
    B, T, I = x.shape
    H = w_hh.shape[1]

    # Pad batch to a sublane multiple (8) and hidden to a lane multiple (128).
    B_pad = max(8, ((B + 7) // 8) * 8)
    H_pad = max(128, ((H + 127) // 128) * 128)

    def pad_gates(a):
        # (4H, ...) -> (4*H_pad, ...): each of the 4 gate blocks is zero padded
        # from H to H_pad rows (padded hidden units stay exactly zero).
        a4 = a.reshape((4, H) + a.shape[1:])
        out = jnp.zeros((4, H_pad) + a.shape[1:], a.dtype).at[:, :H].set(a4)
        return out.reshape((4 * H_pad,) + a.shape[1:])

    w_ih_p = pad_gates(w_ih.astype(jnp.float32))                 # (4H_pad, I)
    w_hh_p = pad_gates(w_hh.astype(jnp.float32))                 # (4H_pad, H)
    w_hh_p = jnp.zeros((4 * H_pad, H_pad), jnp.float32).at[:, :H].set(w_hh_p)
    bias_p = pad_gates((b_ih + b_hh).astype(jnp.float32))        # (4H_pad,)

    # Input projection hoisted out of the serial loop: one batched matmul over
    # all T*B rows, bias fused here (deleted from the per-step kernel work).
    x_p = jnp.zeros((B_pad, T, I), jnp.float32).at[:B].set(x.astype(jnp.float32))
    x_proj = jnp.einsum("bti,gi->btg", x_p, w_ih_p) + bias_p[None, None, :]
    x_proj_tm = jnp.transpose(x_proj, (1, 0, 2))                 # (T, B_pad, 4H_pad)

    whh_t = jnp.transpose(w_hh_p)                                # (H_pad, 4H_pad)

    # VMEM footprint (f32): x_proj T*B_pad*4H_pad + W_hh^T H_pad*4H_pad + out
    # -> a few hundred KiB at these shapes; comfortably within all generations
    # (including v7x's 64 MiB), so default vmem limits are fine.
    h_last = pl.pallas_call(
        _lstm_recurrence_kernel,
        out_shape=jax.ShapeDtypeStruct((B_pad, H_pad), jnp.float32),
        in_specs=[
            pl.BlockSpec(memory_space=pltpu.MemorySpace.VMEM),   # x_proj (resident)
            pl.BlockSpec(memory_space=pltpu.MemorySpace.VMEM),   # W_hh^T (resident)
        ],
        out_specs=pl.BlockSpec(memory_space=pltpu.MemorySpace.VMEM),
    )(x_proj_tm, whh_t)

    # fc head on the last hidden state: tiny (B, H) @ (H, 1) + b, kept in XLA.
    return h_last[:B, :H] @ fc_w.T + fc_b


def _reference_forward(x, params):
    """Pure-JAX reference of the same PyTorch semantics (for sanity check)."""
    w_ih, w_hh, b_ih, b_hh, fc_w, fc_b = params
    B, T, I = x.shape
    H = w_hh.shape[1]
    h = jnp.zeros((B, H), jnp.float32)
    c = jnp.zeros((B, H), jnp.float32)

    def step(carry, x_t):
        h, c = carry
        gates = x_t @ w_ih.T + h @ w_hh.T + b_ih + b_hh
        i = jax.nn.sigmoid(gates[:, 0 * H:1 * H])
        f = jax.nn.sigmoid(gates[:, 1 * H:2 * H])
        g = jnp.tanh(gates[:, 2 * H:3 * H])
        o = jax.nn.sigmoid(gates[:, 3 * H:4 * H])
        c = f * c + i * g
        h = o * jnp.tanh(c)
        return (h, c), None

    (h, _), _ = jax.lax.scan(step, (h, c), jnp.transpose(x, (1, 0, 2)))
    return h @ fc_w.T + fc_b


def init_params(key, input_size, hidden_size):
    """Deterministic init matching PyTorch nn.LSTM / nn.Linear shapes."""
    k = 1.0 / np.sqrt(hidden_size)
    keys = jax.random.split(key, 6)
    w_ih = jax.random.uniform(keys[0], (4 * hidden_size, input_size),
                              jnp.float32, -k, k)
    w_hh = jax.random.uniform(keys[1], (4 * hidden_size, hidden_size),
                              jnp.float32, -k, k)
    b_ih = jax.random.uniform(keys[2], (4 * hidden_size,), jnp.float32, -k, k)
    b_hh = jax.random.uniform(keys[3], (4 * hidden_size,), jnp.float32, -k, k)
    fc_w = jax.random.uniform(keys[4], (1, hidden_size), jnp.float32, -k, k)
    fc_b = jax.random.uniform(keys[5], (1,), jnp.float32, -k, k)
    return (w_ih, w_hh, b_ih, b_hh, fc_w, fc_b)


if __name__ == "__main__":
    # Small shapes consistent with the module: batch=2, seq=8, input_size=1,
    # hidden_size=50 (the module's default; padded to 128 lanes internally).
    B, T, I, H = 2, 8, 1, 50

    key = jax.random.PRNGKey(0)
    k_x, k_p = jax.random.split(key)
    x = jax.random.normal(k_x, (B, T, I), jnp.float32)
    params = init_params(k_p, I, H)

    fwd = jax.jit(lstm_model_forward)
    y = fwd(x, params)
    y = jax.block_until_ready(y)

    y_ref = _reference_forward(x, params)
    np.testing.assert_allclose(np.asarray(y), np.asarray(y_ref),
                               rtol=1e-5, atol=1e-5)
    assert y.shape == (B, 1)
    print("KERNEL_OK")
</pallas_src>

<mosaic_0001>
module attributes {stable_mosaic.version = 11 : i64} {
  func.func @_lstm_recurrence_kernel(%arg0: memref<8x8x512xf32, #tpu.memory_space<vmem>>, %arg1: memref<128x512xf32, #tpu.memory_space<vmem>>, %arg2: memref<8x128xf32, #tpu.memory_space<vmem>>) attributes {dimension_semantics = [], scalar_prefetch = 0 : i64, scratch_operands = 0 : i64, tpu.core_type = #tpu.core_type<tc>} {
    %c0 = arith.constant 0 : index
    %c0_0 = arith.constant 0 : index
    %0 = vector.load %arg1[%c0, %c0_0] : memref<128x512xf32, #tpu.memory_space<vmem>>, vector<128x512xf32>
    %cst = arith.constant 0.000000e+00 : f32
    %1 = vector.broadcast %cst : f32 to vector<8x128xf32>
    %cst_1 = arith.constant 0.000000e+00 : f32
    %2 = vector.broadcast %cst_1 : f32 to vector<8x128xf32>
    %c0_i32 = arith.constant 0 : i32
    %3 = arith.index_cast %c0_i32 : i32 to index
    %c0_2 = arith.constant 0 : index
    %c0_3 = arith.constant 0 : index
    %4 = vector.load %arg0[%3, %c0_2, %c0_3] : memref<8x8x512xf32, #tpu.memory_space<vmem>>, vector<1x8x512xf32>
    %5 = vector.shape_cast %4 : vector<1x8x512xf32> to vector<8x512xf32>
    %cst_4 = arith.constant dense<0.000000e+00> : vector<8x512xf32>
    %6 = tpu.matmul %1, %0, %cst_4 {dimension_numbers = #tpu.dot_dimension_numbers<[1], [0], [0], [1], [0, 0, 1, 1], [], []>} : vector<8x128xf32>, vector<128x512xf32>, vector<8x512xf32> -> vector<8x512xf32>
    %7 = arith.addf %5, %6 : vector<8x512xf32>
    %8 = vector.extract_strided_slice %7 {offsets = [0, 0], sizes = [8, 128], strides = [1, 1]} : vector<8x512xf32> to vector<8x128xf32>
    %9 = arith.negf %8 : vector<8x128xf32>
    %10 = math.exp %9 : vector<8x128xf32>
    %cst_5 = arith.constant 1.000000e+00 : f32
    %11 = vector.broadcast %cst_5 : f32 to vector<8x128xf32>
    %12 = arith.addf %11, %10 : vector<8x128xf32>
    %13 = arith.divf %11, %12 : vector<8x128xf32>
    %14 = vector.extract_strided_slice %7 {offsets = [0, 128], sizes = [8, 128], strides = [1, 1]} : vector<8x512xf32> to vector<8x128xf32>
    %15 = arith.negf %14 : vector<8x128xf32>
    %16 = math.exp %15 : vector<8x128xf32>
    %cst_6 = arith.constant 1.000000e+00 : f32
    %17 = vector.broadcast %cst_6 : f32 to vector<8x128xf32>
    %18 = arith.addf %17, %16 : vector<8x128xf32>
    %19 = arith.divf %17, %18 : vector<8x128xf32>
    %20 = vector.extract_strided_slice %7 {offsets = [0, 256], sizes = [8, 128], strides = [1, 1]} : vector<8x512xf32> to vector<8x128xf32>
    %21 = math.tanh %20 : vector<8x128xf32>
    %22 = vector.extract_strided_slice %7 {offsets = [0, 384], sizes = [8, 128], strides = [1, 1]} : vector<8x512xf32> to vector<8x128xf32>
    %23 = arith.negf %22 : vector<8x128xf32>
    %24 = math.exp %23 : vector<8x128xf32>
    %cst_7 = arith.constant 1.000000e+00 : f32
    %25 = vector.broadcast %cst_7 : f32 to vector<8x128xf32>
    %26 = arith.addf %25, %24 : vector<8x128xf32>
    %27 = arith.divf %25, %26 : vector<8x128xf32>
    %28 = arith.mulf %19, %2 : vector<8x128xf32>
    %29 = arith.mulf %13, %21 : vector<8x128xf32>
    %30 = arith.addf %28, %29 : vector<8x128xf32>
    %31 = math.tanh %30 : vector<8x128xf32>
    %32 = arith.mulf %27, %31 : vector<8x128xf32>
    %c1_i32 = arith.constant 1 : i32
    %33 = arith.index_cast %c1_i32 : i32 to index
    %c0_8 = arith.constant 0 : index
    %c0_9 = arith.constant 0 : index
    %34 = vector.load %arg0[%33, %c0_8, %c0_9] : memref<8x8x512xf32, #tpu.memory_space<vmem>>, vector<1x8x512xf32>
    %35 = vector.shape_cast %34 : vector<1x8x512xf32> to vector<8x512xf32>
    %cst_10 = arith.constant dense<0.000000e+00> : vector<8x512xf32>
    %36 = tpu.matmul %32, %0, %cst_10 {dimension_numbers = #tpu.dot_dimension_numbers<[1], [0], [0], [1], [0, 0, 1, 1], [], []>} : vector<8x128xf32>, vector<128x512xf32>, vector<8x512xf32> -> vector<8x512xf32>
    %37 = arith.addf %35, %36 : vector<8x512xf32>
    %38 = vector.extract_strided_slice %37 {offsets = [0, 0], sizes = [8, 128], strides = [1, 1]} : vector<8x512xf32> to vector<8x128xf32>
    %39 = arith.negf %38 : vector<8x128xf32>
    %40 = math.exp %39 : vector<8x128xf32>
    %cst_11 = arith.constant 1.000000e+00 : f32
    %41 = vector.broadcast %cst_11 : f32 to vector<8x128xf32>
    %42 = arith.addf %41, %40 : vector<8x128xf32>
    %43 = arith.divf %41, %42 : vector<8x128xf32>
    %44 = vector.extract_strided_slice %37 {offsets = [0, 128], sizes = [8, 128], strides = [1, 1]} : vector<8x512xf32> to vector<8x128xf32>
    %45 = arith.negf %44 : vector<8x128xf32>
    %46 = math.exp %45 : vector<8x128xf32>
    %cst_12 = arith.constant 1.000000e+00 : f32
    %47 = vector.broadcast %cst_12 : f32 to vector<8x128xf32>
    %48 = arith.addf %47, %46 : vector<8x128xf32>
    %49 = arith.divf %47, %48 : vector<8x128xf32>
    %50 = vector.extract_strided_slice %37 {offsets = [0, 256], sizes = [8, 128], strides = [1, 1]} : vector<8x512xf32> to vector<8x128xf32>
    %51 = math.tanh %50 : vector<8x128xf32>
    %52 = vector.extract_strided_slice %37 {offsets = [0, 384], sizes = [8, 128], strides = [1, 1]} : vector<8x512xf32> to vector<8x128xf32>
    %53 = arith.negf %52 : vector<8x128xf32>
    %54 = math.exp %53 : vector<8x128xf32>
    %cst_13 = arith.constant 1.000000e+00 : f32
    %55 = vector.broadcast %cst_13 : f32 to vector<8x128xf32>
    %56 = arith.addf %55, %54 : vector<8x128xf32>
    %57 = arith.divf %55, %56 : vector<8x128xf32>
    %58 = arith.mulf %49, %30 : vector<8x128xf32>
    %59 = arith.mulf %43, %51 : vector<8x128xf32>
    %60 = arith.addf %58, %59 : vector<8x128xf32>
    %61 = math.tanh %60 : vector<8x128xf32>
    %62 = arith.mulf %57, %61 : vector<8x128xf32>
    %c2_i32 = arith.constant 2 : i32
    %63 = arith.index_cast %c2_i32 : i32 to index
    %c0_14 = arith.constant 0 : index
    %c0_15 = arith.constant 0 : index
    %64 = vector.load %arg0[%63, %c0_14, %c0_15] : memref<8x8x512xf32, #tpu.memory_space<vmem>>, vector<1x8x512xf32>
    %65 = vector.shape_cast %64 : vector<1x8x512xf32> to vector<8x512xf32>
    %cst_16 = arith.constant dense<0.000000e+00> : vector<8x512xf32>
    %66 = tpu.matmul %62, %0, %cst_16 {dimension_numbers = #tpu.dot_dimension_numbers<[1], [0], [0], [1], [0, 0, 1, 1], [], []>} : vector<8x128xf32>, vector<128x512xf32>, vector<8x512xf32> -> vector<8x512xf32>
    %67 = arith.addf %65, %66 : vector<8x512xf32>
    %68 = vector.extract_strided_slice %67 {offsets = [0, 0], sizes = [8, 128], strides = [1, 1]} : vector<8x512xf32> to vector<8x128xf32>
    %69 = arith.negf %68 : vector<8x128xf32>
    %70 = math.exp %69 : vector<8x128xf32>
    %cst_17 = arith.constant 1.000000e+00 : f32
    %71 = vector.broadcast %cst_17 : f32 to vector<8x128xf32>
    %72 = arith.addf %71, %70 : vector<8x128xf32>
    %73 = arith.divf %71, %72 : vector<8x128xf32>
    %74 = vector.extract_strided_slice %67 {offsets = [0, 128], sizes = [8, 128], strides = [1, 1]} : vector<8x512xf32> to vector<8x128xf32>
    %75 = arith.negf %74 : vector<8x128xf32>
    %76 = math.exp %75 : vector<8x128xf32>
    %cst_18 = arith.constant 1.000000e+00 : f32
    %77 = vector.broadcast %cst_18 : f32 to vector<8x128xf32>
    %78 = arith.addf %77, %76 : vector<8x128xf32>
    %79 = arith.divf %77, %78 : vector<8x128xf32>
    %80 = vector.extract_strided_slice %67 {offsets = [0, 256], sizes = [8, 128], strides = [1, 1]} : vector<8x512xf32> to vector<8x128xf32>
    %81 = math.tanh %80 : vector<8x128xf32>
    %82 = vector.extract_strided_slice %67 {offsets = [0, 384], sizes = [8, 128], strides = [1, 1]} : vector<8x512xf32> to vector<8x128xf32>
    %83 = arith.negf %82 : vector<8x128xf32>
    %84 = math.exp %83 : vector<8x128xf32>
    %cst_19 = arith.constant 1.000000e+00 : f32
    %85 = vector.broadcast %cst_19 : f32 to vector<8x128xf32>
    %86 = arith.addf %85, %84 : vector<8x128xf32>
    %87 = arith.divf %85, %86 : vector<8x128xf32>
    %88 = arith.mulf %79, %60 : vector<8x128xf32>
    %89 = arith.mulf %73, %81 : vector<8x128xf32>
    %90 = arith.addf %88, %89 : vector<8x128xf32>
    %91 = math.tanh %90 : vector<8x128xf32>
    %92 = arith.mulf %87, %91 : vector<8x128xf32>
    %c3_i32 = arith.constant 3 : i32
    %93 = arith.index_cast %c3_i32 : i32 to index
    %c0_20 = arith.constant 0 : index
    %c0_21 = arith.constant 0 : index
    %94 = vector.load %arg0[%93, %c0_20, %c0_21] : memref<8x8x512xf32, #tpu.memory_space<vmem>>, vector<1x8x512xf32>
    %95 = vector.shape_cast %94 : vector<1x8x512xf32> to vector<8x512xf32>
    %cst_22 = arith.constant dense<0.000000e+00> : vector<8x512xf32>
    %96 = tpu.matmul %92, %0, %cst_22 {dimension_numbers = #tpu.dot_dimension_numbers<[1], [0], [0], [1], [0, 0, 1, 1], [], []>} : vector<8x128xf32>, vector<128x512xf32>, vector<8x512xf32> -> vector<8x512xf32>
    %97 = arith.addf %95, %96 : vector<8x512xf32>
    %98 = vector.extract_strided_slice %97 {offsets = [0, 0], sizes = [8, 128], strides = [1, 1]} : vector<8x512xf32> to vector<8x128xf32>
    %99 = arith.negf %98 : vector<8x128xf32>
    %100 = math.exp %99 : vector<8x128xf32>
    %cst_23 = arith.constant 1.000000e+00 : f32
    %101 = vector.broadcast %cst_23 : f32 to vector<8x128xf32>
    %102 = arith.addf %101, %100 : vector<8x128xf32>
    %103 = arith.divf %101, %102 : vector<8x128xf32>
    %104 = vector.extract_strided_slice %97 {offsets = [0, 128], sizes = [8, 128], strides = [1, 1]} : vector<8x512xf32> to vector<8x128xf32>
    %105 = arith.negf %104 : vector<8x128xf32>
    %106 = math.exp %105 : vector<8x128xf32>
    %cst_24 = arith.constant 1.000000e+00 : f32
    %107 = vector.broadcast %cst_24 : f32 to vector<8x128xf32>
    %108 = arith.addf %107, %106 : vector<8x128xf32>
    %109 = arith.divf %107, %108 : vector<8x128xf32>
    %110 = vector.extract_strided_slice %97 {offsets = [0, 256], sizes = [8, 128], strides = [1, 1]} : vector<8x512xf32> to vector<8x128xf32>
    %111 = math.tanh %110 : vector<8x128xf32>
    %112 = vector.extract_strided_slice %97 {offsets = [0, 384], sizes = [8, 128], strides = [1, 1]} : vector<8x512xf32> to vector<8x128xf32>
    %113 = arith.negf %112 : vector<8x128xf32>
    %114 = math.exp %113 : vector<8x128xf32>
    %cst_25 = arith.constant 1.000000e+00 : f32
    %115 = vector.broadcast %cst_25 : f32 to vector<8x128xf32>
    %116 = arith.addf %115, %114 : vector<8x128xf32>
    %117 = arith.divf %115, %116 : vector<8x128xf32>
    %118 = arith.mulf %109, %90 : vector<8x128xf32>
    %119 = arith.mulf %103, %111 : vector<8x128xf32>
    %120 = arith.addf %118, %119 : vector<8x128xf32>
    %121 = math.tanh %120 : vector<8x128xf32>
    %122 = arith.mulf %117, %121 : vector<8x128xf32>
    %c4_i32 = arith.constant 4 : i32
    %123 = arith.index_cast %c4_i32 : i32 to index
    %c0_26 = arith.constant 0 : index
    %c0_27 = arith.constant 0 : index
    %124 = vector.load %arg0[%123, %c0_26, %c0_27] : memref<8x8x512xf32, #tpu.memory_space<vmem>>, vector<1x8x512xf32>
    %125 = vector.shape_cast %124 : vector<1x8x512xf32> to vector<8x512xf32>
    %cst_28 = arith.constant dense<0.000000e+00> : vector<8x512xf32>
    %126 = tpu.matmul %122, %0, %cst_28 {dimension_numbers = #tpu.dot_dimension_numbers<[1], [0], [0], [1], [0, 0, 1, 1], [], []>} : vector<8x128xf32>, vector<128x512xf32>, vector<8x512xf32> -> vector<8x512xf32>
    %127 = arith.addf %125, %126 : vector<8x512xf32>
    %128 = vector.extract_strided_slice %127 {offsets = [0, 0], sizes = [8, 128], strides = [1, 1]} : vector<8x512xf32> to vector<8x128xf32>
    %129 = arith.negf %128 : vector<8x128xf32>
    %130 = math.exp %129 : vector<8x128xf32>
    %cst_29 = arith.constant 1.000000e+00 : f32
    %131 = vector.broadcast %cst_29 : f32 to vector<8x128xf32>
    %132 = arith.addf %131, %130 : vector<8x128xf32>
    %133 = arith.divf %131, %132 : vector<8x128xf32>
    %134 = vector.extract_strided_slice %127 {offsets = [0, 128], sizes = [8, 128], strides = [1, 1]} : vector<8x512xf32> to vector<8x128xf32>
    %135 = arith.negf %134 : vector<8x128xf32>
    %136 = math.exp %135 : vector<8x128xf32>
    %cst_30 = arith.constant 1.000000e+00 : f32
    %137 = vector.broadcast %cst_30 : f32 to vector<8x128xf32>
    %138 = arith.addf %137, %136 : vector<8x128xf32>
    %139 = arith.divf %137, %138 : vector<8x128xf32>
    %140 = vector.extract_strided_slice %127 {offsets = [0, 256], sizes = [8, 128], strides = [1, 1]} : vector<8x512xf32> to vector<8x128xf32>
    %141 = math.tanh %140 : vector<8x128xf32>
    %142 = vector.extract_strided_slice %127 {offsets = [0, 384], sizes = [8, 128], strides = [1, 1]} : vector<8x512xf32> to vector<8x128xf32>
    %143 = arith.negf %142 : vector<8x128xf32>
    %144 = math.exp %143 : vector<8x128xf32>
    %cst_31 = arith.constant 1.000000e+00 : f32
    %145 = vector.broadcast %cst_31 : f32 to vector<8x128xf32>
    %146 = arith.addf %145, %144 : vector<8x128xf32>
    %147 = arith.divf %145, %146 : vector<8x128xf32>
    %148 = arith.mulf %139, %120 : vector<8x128xf32>
    %149 = arith.mulf %133, %141 : vector<8x128xf32>
    %150 = arith.addf %148, %149 : vector<8x128xf32>
    %151 = math.tanh %150 : vector<8x128xf32>
    %152 = arith.mulf %147, %151 : vector<8x128xf32>
    %c5_i32 = arith.constant 5 : i32
    %153 = arith.index_cast %c5_i32 : i32 to index
    %c0_32 = arith.constant 0 : index
    %c0_33 = arith.constant 0 : index
    %154 = vector.load %arg0[%153, %c0_32, %c0_33] : memref<8x8x512xf32, #tpu.memory_space<vmem>>, vector<1x8x512xf32>
    %155 = vector.shape_cast %154 : vector<1x8x512xf32> to vector<8x512xf32>
    %cst_34 = arith.constant dense<0.000000e+00> : vector<8x512xf32>
    %156 = tpu.matmul %152, %0, %cst_34 {dimension_numbers = #tpu.dot_dimension_numbers<[1], [0], [0], [1], [0, 0, 1, 1], [], []>} : vector<8x128xf32>, vector<128x512xf32>, vector<8x512xf32> -> vector<8x512xf32>
    %157 = arith.addf %155, %156 : vector<8x512xf32>
    %158 = vector.extract_strided_slice %157 {offsets = [0, 0], sizes = [8, 128], strides = [1, 1]} : vector<8x512xf32> to vector<8x128xf32>
    %159 = arith.negf %158 : vector<8x128xf32>
    %160 = math.exp %159 : vector<8x128xf32>
    %cst_35 = arith.constant 1.000000e+00 : f32
    %161 = vector.broadcast %cst_35 : f32 to vector<8x128xf32>
    %162 = arith.addf %161, %160 : vector<8x128xf32>
    %163 = arith.divf %161, %162 : vector<8x128xf32>
    %164 = vector.extract_strided_slice %157 {offsets = [0, 128], sizes = [8, 128], strides = [1, 1]} : vector<8x512xf32> to vector<8x128xf32>
    %165 = arith.negf %164 : vector<8x128xf32>
    %166 = math.exp %165 : vector<8x128xf32>
    %cst_36 = arith.constant 1.000000e+00 : f32
    %167 = vector.broadcast %cst_36 : f32 to vector<8x128xf32>
    %168 = arith.addf %167, %166 : vector<8x128xf32>
    %169 = arith.divf %167, %168 : vector<8x128xf32>
    %170 = vector.extract_strided_slice %157 {offsets = [0, 256], sizes = [8, 128], strides = [1, 1]} : vector<8x512xf32> to vector<8x128xf32>
    %171 = math.tanh %170 : vector<8x128xf32>
    %172 = vector.extract_strided_slice %157 {offsets = [0, 384], sizes = [8, 128], strides = [1, 1]} : vector<8x512xf32> to vector<8x128xf32>
    %173 = arith.negf %172 : vector<8x128xf32>
    %174 = math.exp %173 : vector<8x128xf32>
    %cst_37 = arith.constant 1.000000e+00 : f32
    %175 = vector.broadcast %cst_37 : f32 to vector<8x128xf32>
    %176 = arith.addf %175, %174 : vector<8x128xf32>
    %177 = arith.divf %175, %176 : vector<8x128xf32>
    %178 = arith.mulf %169, %150 : vector<8x128xf32>
    %179 = arith.mulf %163, %171 : vector<8x128xf32>
    %180 = arith.addf %178, %179 : vector<8x128xf32>
    %181 = math.tanh %180 : vector<8x128xf32>
    %182 = arith.mulf %177, %181 : vector<8x128xf32>
    %c6_i32 = arith.constant 6 : i32
    %183 = arith.index_cast %c6_i32 : i32 to index
    %c0_38 = arith.constant 0 : index
    %c0_39 = arith.constant 0 : index
    %184 = vector.load %arg0[%183, %c0_38, %c0_39] : memref<8x8x512xf32, #tpu.memory_space<vmem>>, vector<1x8x512xf32>
    %185 = vector.shape_cast %184 : vector<1x8x512xf32> to vector<8x512xf32>
    %cst_40 = arith.constant dense<0.000000e+00> : vector<8x512xf32>
    %186 = tpu.matmul %182, %0, %cst_40 {dimension_numbers = #tpu.dot_dimension_numbers<[1], [0], [0], [1], [0, 0, 1, 1], [], []>} : vector<8x128xf32>, vector<128x512xf32>, vector<8x512xf32> -> vector<8x512xf32>
    %187 = arith.addf %185, %186 : vector<8x512xf32>
    %188 = vector.extract_strided_slice %187 {offsets = [0, 0], sizes = [8, 128], strides = [1, 1]} : vector<8x512xf32> to vector<8x128xf32>
    %189 = arith.negf %188 : vector<8x128xf32>
    %190 = math.exp %189 : vector<8x128xf32>
    %cst_41 = arith.constant 1.000000e+00 : f32
    %191 = vector.broadcast %cst_41 : f32 to vector<8x128xf32>
    %192 = arith.addf %191, %190 : vector<8x128xf32>
    %193 = arith.divf %191, %192 : vector<8x128xf32>
    %194 = vector.extract_strided_slice %187 {offsets = [0, 128], sizes = [8, 128], strides = [1, 1]} : vector<8x512xf32> to vector<8x128xf32>
    %195 = arith.negf %194 : vector<8x128xf32>
    %196 = math.exp %195 : vector<8x128xf32>
    %cst_42 = arith.constant 1.000000e+00 : f32
    %197 = vector.broadcast %cst_42 : f32 to vector<8x128xf32>
    %198 = arith.addf %197, %196 : vector<8x128xf32>
    %199 = arith.divf %197, %198 : vector<8x128xf32>
    %200 = vector.extract_strided_slice %187 {offsets = [0, 256], sizes = [8, 128], strides = [1, 1]} : vector<8x512xf32> to vector<8x128xf32>
    %201 = math.tanh %200 : vector<8x128xf32>
    %202 = vector.extract_strided_slice %187 {offsets = [0, 384], sizes = [8, 128], strides = [1, 1]} : vector<8x512xf32> to vector<8x128xf32>
    %203 = arith.negf %202 : vector<8x128xf32>
    %204 = math.exp %203 : vector<8x128xf32>
    %cst_43 = arith.constant 1.000000e+00 : f32
    %205 = vector.broadcast %cst_43 : f32 to vector<8x128xf32>
    %206 = arith.addf %205, %204 : vector<8x128xf32>
    %207 = arith.divf %205, %206 : vector<8x128xf32>
    %208 = arith.mulf %199, %180 : vector<8x128xf32>
    %209 = arith.mulf %193, %201 : vector<8x128xf32>
    %210 = arith.addf %208, %209 : vector<8x128xf32>
    %211 = math.tanh %210 : vector<8x128xf32>
    %212 = arith.mulf %207, %211 : vector<8x128xf32>
    %c7_i32 = arith.constant 7 : i32
    %213 = arith.index_cast %c7_i32 : i32 to index
    %c0_44 = arith.constant 0 : index
    %c0_45 = arith.constant 0 : index
    %214 = vector.load %arg0[%213, %c0_44, %c0_45] : memref<8x8x512xf32, #tpu.memory_space<vmem>>, vector<1x8x512xf32>
    %215 = vector.shape_cast %214 : vector<1x8x512xf32> to vector<8x512xf32>
    %cst_46 = arith.constant dense<0.000000e+00> : vector<8x512xf32>
    %216 = tpu.matmul %212, %0, %cst_46 {dimension_numbers = #tpu.dot_dimension_numbers<[1], [0], [0], [1], [0, 0, 1, 1], [], []>} : vector<8x128xf32>, vector<128x512xf32>, vector<8x512xf32> -> vector<8x512xf32>
    %217 = arith.addf %215, %216 : vector<8x512xf32>
    %218 = vector.extract_strided_slice %217 {offsets = [0, 0], sizes = [8, 128], strides = [1, 1]} : vector<8x512xf32> to vector<8x128xf32>
    %219 = arith.negf %218 : vector<8x128xf32>
    %220 = math.exp %219 : vector<8x128xf32>
    %cst_47 = arith.constant 1.000000e+00 : f32
    %221 = vector.broadcast %cst_47 : f32 to vector<8x128xf32>
    %222 = arith.addf %221, %220 : vector<8x128xf32>
    %223 = arith.divf %221, %222 : vector<8x128xf32>
    %224 = vector.extract_strided_slice %217 {offsets = [0, 128], sizes = [8, 128], strides = [1, 1]} : vector<8x512xf32> to vector<8x128xf32>
    %225 = arith.negf %224 : vector<8x128xf32>
    %226 = math.exp %225 : vector<8x128xf32>
    %cst_48 = arith.constant 1.000000e+00 : f32
    %227 = vector.broadcast %cst_48 : f32 to vector<8x128xf32>
    %228 = arith.addf %227, %226 : vector<8x128xf32>
    %229 = arith.divf %227, %228 : vector<8x128xf32>
    %230 = vector.extract_strided_slice %217 {offsets = [0, 256], sizes = [8, 128], strides = [1, 1]} : vector<8x512xf32> to vector<8x128xf32>
    %231 = math.tanh %230 : vector<8x128xf32>
    %232 = vector.extract_strided_slice %217 {offsets = [0, 384], sizes = [8, 128], strides = [1, 1]} : vector<8x512xf32> to vector<8x128xf32>
    %233 = arith.negf %232 : vector<8x128xf32>
    %234 = math.exp %233 : vector<8x128xf32>
    %cst_49 = arith.constant 1.000000e+00 : f32
    %235 = vector.broadcast %cst_49 : f32 to vector<8x128xf32>
    %236 = arith.addf %235, %234 : vector<8x128xf32>
    %237 = arith.divf %235, %236 : vector<8x128xf32>
    %238 = arith.mulf %229, %210 : vector<8x128xf32>
    %239 = arith.mulf %223, %231 : vector<8x128xf32>
    %240 = arith.addf %238, %239 : vector<8x128xf32>
    %241 = math.tanh %240 : vector<8x128xf32>
    %242 = arith.mulf %237, %241 : vector<8x128xf32>
    %c8_i32 = arith.constant 8 : i32
    %c0_50 = arith.constant 0 : index
    %c0_51 = arith.constant 0 : index
    %243 = vector.load %arg2[%c0_50, %c0_51] : memref<8x128xf32, #tpu.memory_space<vmem>>, vector<8x128xf32>
    tpu.vector_store %arg2[%c0_50, %c0_51], %242 {strides = array<i32>} : memref<8x128xf32, #tpu.memory_space<vmem>>, vector<8x128xf32>,
    return
  }
}

</mosaic_0001>

<llo_original>
// kernel: lstm_model_forward.1
$region0: #{lstm_model_forward.1}
  #allocation0 [shape = 'u32[]', space=smem, size = 0x4, offset = 0x4, fixed_abs, tag = 'smem constant byte address 0x4 - core index']
  #allocation1 [shape = 'u32[144,128]{1,0:T(1,128)}', space=vmem, size = 0x12000, scoped, tag = 'internal scratch']
  %s0 = inlined_call_operand.vmem [shape: f32[8,8,512], index: 0, kind: input, shape index: {}]
  %s1 = inlined_call_operand.vmem [shape: f32[128,512], index: 1, kind: input, shape index: {}]
  %s2 = inlined_call_operand.vmem [shape: f32[8,128], index: 2, kind: output, shape index: {}]
  %s3 = sld [smem:[#allocation0]]
  $region18: #{lstm_model_forward.1} parent=0
    _
  %s5 = ssub.s32 1, %s3
  %s6 = scalar_select 0, %s5, %s3
  // Predicated region
  $region2: #{lstm_model_forward.1} parent=0 // pred_check
    _
  $region3: #{lstm_model_forward.1} parent=0 // pred_check_branch
    %8 = sbr.rel (0) target = $region5
  $region4: #{lstm_model_forward.1} parent=0 // pred_region
    _
  $region5: #{lstm_model_forward.1} parent=0 // pred_fallthru
    _
  // Predicated region
  $region6: #{lstm_model_forward.1} parent=0 // pred_check
    _
  $region7: #{lstm_model_forward.1} parent=0 // pred_check_branch
    %10 = sbr.rel (0) target = $region9
  $region8: #{lstm_model_forward.1} parent=0 // pred_region
    _
  $region9: #{lstm_model_forward.1} parent=0 // pred_fallthru
    _
  %v11 = vld [vmem:[%s1] sm:$0xff]
  %v12 = vld [vmem:[%s1 + $0x8] sm:$0xff]
  %v13 = vld [vmem:[%s1 + $0x10] sm:$0xff]
  %v14 = vld [vmem:[%s1 + $0x18] sm:$0xff]
  %v15 = vld [vmem:[%s1 + $0x20] sm:$0xff]
  %v16 = vld [vmem:[%s1 + $0x28] sm:$0xff]
  %v17 = vld [vmem:[%s1 + $0x30] sm:$0xff]
  %v18 = vld [vmem:[%s1 + $0x38] sm:$0xff]
  %v19 = vld [vmem:[%s1 + $0x40] sm:$0xff]
  %v20 = vld [vmem:[%s1 + $0x48] sm:$0xff]
  %v21 = vld [vmem:[%s1 + $0x50] sm:$0xff]
  %v22 = vld [vmem:[%s1 + $0x58] sm:$0xff]
  %v23 = vld [vmem:[%s1 + $0x60] sm:$0xff]
  %v24 = vld [vmem:[%s1 + $0x68] sm:$0xff]
  %v25 = vld [vmem:[%s1 + $0x70] sm:$0xff]
  %v26 = vld [vmem:[%s1 + $0x78] sm:$0xff]
  %v27 = vld [vmem:[%s1 + $0x80] sm:$0xff]
  %v28 = vld [vmem:[%s1 + $0x88] sm:$0xff]
  %v29 = vld [vmem:[%s1 + $0x90] sm:$0xff]
  %v30 = vld [vmem:[%s1 + $0x98] sm:$0xff]
  %v31 = vld [vmem:[%s1 + $0xa0] sm:$0xff]
  %v32 = vld [vmem:[%s1 + $0xa8] sm:$0xff]
  %v33 = vld [vmem:[%s1 + $0xb0] sm:$0xff]
  %v34 = vld [vmem:[%s1 + $0xb8] sm:$0xff]
  %v35 = vld [vmem:[%s1 + $0xc0] sm:$0xff]
  %v36 = vld [vmem:[%s1 + $0xc8] sm:$0xff]
  %v37 = vld [vmem:[%s1 + $0xd0] sm:$0xff]
  %v38 = vld [vmem:[%s1 + $0xd8] sm:$0xff]
  %v39 = vld [vmem:[%s1 + $0xe0] sm:$0xff]
  %v40 = vld [vmem:[%s1 + $0xe8] sm:$0xff]
  %v41 = vld [vmem:[%s1 + $0xf0] sm:$0xff]
  %v42 = vld [vmem:[%s1 + $0xf8] sm:$0xff]
  %v43 = vld [vmem:[%s1 + $0x100] sm:$0xff]
  %v44 = vld [vmem:[%s1 + $0x108] sm:$0xff]
  %v45 = vld [vmem:[%s1 + $0x110] sm:$0xff]
  %v46 = vld [vmem:[%s1 + $0x118] sm:$0xff]
  %v47 = vld [vmem:[%s1 + $0x120] sm:$0xff]
  %v48 = vld [vmem:[%s1 + $0x128] sm:$0xff]
  %v49 = vld [vmem:[%s1 + $0x130] sm:$0xff]
  %v50 = vld [vmem:[%s1 + $0x138] sm:$0xff]
  %v51 = vld [vmem:[%s1 + $0x140] sm:$0xff]
  %v52 = vld [vmem:[%s1 + $0x148] sm:$0xff]
  %v53 = vld [vmem:[%s1 + $0x150] sm:$0xff]
  %v54 = vld [vmem:[%s1 + $0x158] sm:$0xff]
  %v55 = vld [vmem:[%s1 + $0x160] sm:$0xff]
  %v56 = vld [vmem:[%s1 + $0x168] sm:$0xff]
  %v57 = vld [vmem:[%s1 + $0x170] sm:$0xff]
  %v58 = vld [vmem:[%s1 + $0x178] sm:$0xff]
  %v59 = vld [vmem:[%s1 + $0x180] sm:$0xff]
  %v60 = vld [vmem:[%s1 + $0x188] sm:$0xff]
  %v61 = vld [vmem:[%s1 + $0x190] sm:$0xff]
  %v62 = vld [vmem:[%s1 + $0x198] sm:$0xff]
  %v63 = vld [vmem:[%s1 + $0x1a0] sm:$0xff]
  %v64 = vld [vmem:[%s1 + $0x1a8] sm:$0xff]
  %v65 = vld [vmem:[%s1 + $0x1b0] sm:$0xff]
  %v66 = vld [vmem:[%s1 + $0x1b8] sm:$0xff]
  %v67 = vld [vmem:[%s1 + $0x1c0] sm:$0xff]
  %v68 = vld [vmem:[%s1 + $0x1c8] sm:$0xff]
  %v69 = vld [vmem:[%s1 + $0x1d0] sm:$0xff]
  %v70 = vld [vmem:[%s1 + $0x1d8] sm:$0xff]
  %v71 = vld [vmem:[%s1 + $0x1e0] sm:$0xff]
  %v72 = vld [vmem:[%s1 + $0x1e8] sm:$0xff]
  %v73 = vld [vmem:[%s1 + $0x1f0] sm:$0xff]
  %v74 = vld [vmem:[%s1 + $0x1f8] sm:$0xff]
  %v75 = vld [vmem:[%s0] sm:$0xff]
  %v76 = vld [vmem:[%s0 + $0x8] sm:$0xff]
  %v77 = vld [vmem:[%s0 + $0x10] sm:$0xff]
  %v78 = vld [vmem:[%s0 + $0x18] sm:$0xff]
  %79 = vmatprep.subr.mxu0 %v12
  %80 = vmatpush1.msra.mxu0 %v11
  %81 = vmatprep.subr.mxu0 %v16
  %82 = vmatpush1.msra.mxu0 %v15
  %83 = vmatprep.subr.mxu0 %v20
  %84 = vmatpush1.msra.mxu0 %v19
  %85 = vmatprep.subr.mxu0 %v24
  %86 = vmatpush1.msra.mxu0 %v23
  %87 = vmatprep.subr.mxu0 %v28
  %88 = vmatpush1.msra.mxu0 %v27
  %89 = vmatprep.subr.mxu0 %v32
  %90 = vmatpush1.msra.mxu0 %v31
  %91 = vmatprep.subr.mxu0 %v36
  %92 = vmatpush1.msra.mxu0 %v35
  %93 = vmatprep.subr.mxu0 %v40
  %94 = vmatpush1.msra.mxu0 %v39
  %95 = vmatprep.subr.mxu0 %v44
  %96 = vmatpush1.msra.mxu0 %v43
  %97 = vmatprep.subr.mxu0 %v48
  %98 = vmatpush1.msra.mxu0 %v47
  %99 = vmatprep.subr.mxu0 %v52
  %100 = vmatpush1.msra.mxu0 %v51
  %101 = vmatprep.subr.mxu0 %v56
  %102 = vmatpush1.msra.mxu0 %v55
  %103 = vmatprep.subr.mxu0 %v60
  %104 = vmatpush1.msra.mxu0 %v59
  %105 = vmatprep.subr.mxu0 %v64
  %106 = vmatpush1.msra.mxu0 %v63
  %107 = vmatprep.subr.mxu0 %v68
  %108 = vmatpush1.msra.mxu0 %v67
  %109 = vmatprep.subr.mxu0 %v72
  %110 = vmatpush1.msra.mxu0 %v71
  %111 = vmatprep.subr.mxu0 0.0
  %112 = vmatpush1.msra.mxu0 0.0
  %113 = vmatprep.subr.mxu0 0.0
  %114 = vmatpush1.msra.mxu0 0.0
  %115 = vmatprep.subr.mxu0 0.0
  %116 = vmatpush1.msra.mxu0 0.0
  %117 = vmatprep.subr.mxu0 0.0
  %118 = vmatpush1.msra.mxu0 0.0
  %119 = vmatprep.subr.mxu0 0.0
  %120 = vmatpush1.msra.mxu0 0.0
  %121 = vmatprep.subr.mxu0 0.0
  %122 = vmatpush1.msra.mxu0 0.0
  %123 = vmatprep.subr.mxu0 0.0
  %124 = vmatpush1.msra.mxu0 0.0
  %125 = vmatprep.subr.mxu0 0.0
  %126 = vmatpush1.msra.mxu0 0.0
  %127 = vmatprep.subr.mxu0 0.0
  %128 = vmatpush1.msra.mxu0 0.0
  %129 = vmatprep.subr.mxu0 0.0
  %130 = vmatpush1.msra.mxu0 0.0
  %131 = vmatprep.subr.mxu0 0.0
  %132 = vmatpush1.msra.mxu0 0.0
  %133 = vmatprep.subr.mxu0 0.0
  %134 = vmatpush1.msra.mxu0 0.0
  %135 = vmatprep.subr.mxu0 0.0
  %136 = vmatpush1.msra.mxu0 0.0
  %137 = vmatprep.subr.mxu0 0.0
  %138 = vmatpush1.msra.mxu0 0.0
  %139 = vmatprep.subr.mxu0 0.0
  %140 = vmatpush1.msra.mxu0 0.0
  %141 = vmatprep.subr.mxu0 0.0
  %142 = vmatpush1.msra.mxu0 0.0
  %143 = vmatprep.mubr.f32.mxu0 0.0
  %144 = vmatmul.mubr.f32.gmra.mrb[0].mxu0 0.0
  %v145 = vpop.f32.mrb[0].mxu0
  %v146 = vadd.f32 0.0, %v145
  %v147 = vpop.f32.mrb[0].mxu0
  %v148 = vadd.f32 0.0, %v147
  %149 = vdwg.mxu0
  %150 = vmatprep.subr.mxu0 %v14
  %151 = vmatpush1.msra.mxu0 %v13
  %152 = vmatprep.subr.mxu0 %v18
  %153 = vmatpush1.msra.mxu0 %v17
  %154 = vmatprep.subr.mxu0 %v22
  %155 = vmatpush1.msra.mxu0 %v21
  %156 = vmatprep.subr.mxu0 %v26
  %157 = vmatpush1.msra.mxu0 %v25
  %158 = vmatprep.subr.mxu0 %v30
  %159 = vmatpush1.msra.mxu0 %v29
  %160 = vmatprep.subr.mxu0 %v34
  %161 = vmatpush1.msra.mxu0 %v33
  %162 = vmatprep.subr.mxu0 %v38
  %163 = vmatpush1.msra.mxu0 %v37
  %164 = vmatprep.subr.mxu0 %v42
  %165 = vmatpush1.msra.mxu0 %v41
  %166 = vmatprep.subr.mxu0 %v46
  %167 = vmatpush1.msra.mxu0 %v45
  %168 = vmatprep.subr.mxu0 %v50
  %169 = vmatpush1.msra.mxu0 %v49
  %170 = vmatprep.subr.mxu0 %v54
  %171 = vmatpush1.msra.mxu0 %v53
  %172 = vmatprep.subr.mxu0 %v58
  %173 = vmatpush1.msra.mxu0 %v57
  %174 = vmatprep.subr.mxu0 %v62
  %175 = vmatpush1.msra.mxu0 %v61
  %176 = vmatprep.subr.mxu0 %v66
  %177 = vmatpush1.msra.mxu0 %v65
  %178 = vmatprep.subr.mxu0 %v70
  %179 = vmatpush1.msra.mxu0 %v69
  %180 = vmatprep.subr.mxu0 %v74
  %181 = vmatpush1.msra.mxu0 %v73
  %182 = vmatprep.subr.mxu0 0.0
  %183 = vmatpush1.msra.mxu0 0.0
  %184 = vmatprep.subr.mxu0 0.0
  %185 = vmatpush1.msra.mxu0 0.0
  %186 = vmatprep.subr.mxu0 0.0
  %187 = vmatpush1.msra.mxu0 0.0
  %188 = vmatprep.subr.mxu0 0.0
  %189 = vmatpush1.msra.mxu0 0.0
  %190 = vmatprep.subr.mxu0 0.0
  %191 = vmatpush1.msra.mxu0 0.0
  %192 = vmatprep.subr.mxu0 0.0
  %193 = vmatpush1.msra.mxu0 0.0
  %194 = vmatprep.subr.mxu0 0.0
  %195 = vmatpush1.msra.mxu0 0.0
  %196 = vmatprep.subr.mxu0 0.0
  %197 = vmatpush1.msra.mxu0 0.0
  %198 = vmatprep.subr.mxu0 0.0
  %199 = vmatpush1.msra.mxu0 0.0
  %200 = vmatprep.subr.mxu0 0.0
  %201 = vmatpush1.msra.mxu0 0.0
  %202 = vmatprep.subr.mxu0 0.0
  %203 = vmatpush1.msra.mxu0 0.0
  %204 = vmatprep.subr.mxu0 0.0
  %205 = vmatpush1.msra.mxu0 0.0
  %206 = vmatprep.subr.mxu0 0.0
  %207 = vmatpush1.msra.mxu0 0.0
  %208 = vmatprep.subr.mxu0 0.0
  %209 = vmatpush1.msra.mxu0 0.0
  %210 = vmatprep.subr.mxu0 0.0
  %211 = vmatpush1.msra.mxu0 0.0
  %212 = vmatprep.subr.mxu0 0.0
  %213 = vmatpush1.msra.mxu0 0.0
  %214 = vmatprep.mubr.f32.mxu0 0.0
  %215 = vmatmul.mubr.f32.gmra.mrb[0].mxu0 0.0
  %v216 = vpop.f32.mrb[0].mxu0
  %v217 = vadd.f32 0.0, %v216
  %v218 = vpop.f32.mrb[0].mxu0
  %v219 = vadd.f32 0.0, %v218
  %220 = vdwg.mxu0
  %v221 = vadd.f32 %v75, %v146
  %v222 = vadd.f32 %v76, %v148
  %v223 = vadd.f32 %v77, %v217
  %v224 = vadd.f32 %v78, %v219
  %v225 = vxor.u32 %v221, 2147483648
  %v226 = vmul.f32 %v225, 1.442695
  %v227 = vpow.pop %v226
  %v228 = vadd.f32 %v227, 1.0
  %v229 = vrcp.pop %v228
  %v230 = vmul.f32 1.0, %v229
  %v231 = vxor.u32 %v222, 2147483648
  %v232 = vmul.f32 %v231, 1.442695
  %v233 = vpow.pop %v232
  %v234 = vadd.f32 %v233, 1.0
  %v235 = vrcp.pop %v234
  %v236 = vmul.f32 1.0, %v235
  %v237 = vtanh.pop %v223
  %v238 = vxor.u32 %v224, 2147483648
  %v239 = vmul.f32 %v238, 1.442695
  %v240 = vpow.pop %v239
  %v241 = vadd.f32 %v240, 1.0
  %v242 = vrcp.pop %v241
  %v243 = vmul.f32 1.0, %v242
  %v244 = vmul.f32 %v236, 0.0
  %v245 = vmul.f32 %v230, %v237
  %v246 = vadd.f32 %v244, %v245
  %v247 = vtanh.pop %v246
  %v248 = vmul.f32 %v243, %v247
  %s249 = scalar_lea.vmem %s0, 32
  %v250 = vld [vmem:[%s249] sm:$0xff]
  %v251 = vld [vmem:[%s249 + $0x8] sm:$0xff]
  %v252 = vld [vmem:[%s249 + $0x10] sm:$0xff]
  %v253 = vld [vmem:[%s249 + $0x18] sm:$0xff]
  %254 = vmatprep.subr.mxu0 %v12
  %255 = vmatpush1.msra.mxu0 %v11
  %256 = vmatprep.subr.mxu0 %v16
  %257 = vmatpush1.msra.mxu0 %v15
  %258 = vmatprep.subr.mxu0 %v20
  %259 = vmatpush1.msra.mxu0 %v19
  %260 = vmatprep.subr.mxu0 %v24
  %261 = vmatpush1.msra.mxu0 %v23
  %262 = vmatprep.subr.mxu0 %v28
  %263 = vmatpush1.msra.mxu0 %v27
  %264 = vmatprep.subr.mxu0 %v32
  %265 = vmatpush1.msra.mxu0 %v31
  %266 = vmatprep.subr.mxu0 %v36
  %267 = vmatpush1.msra.mxu0 %v35
  %268 = vmatprep.subr.mxu0 %v40
  %269 = vmatpush1.msra.mxu0 %v39
  %270 = vmatprep.subr.mxu0 %v44
  %271 = vmatpush1.msra.mxu0 %v43
  %272 = vmatprep.subr.mxu0 %v48
  %273 = vmatpush1.msra.mxu0 %v47
  %274 = vmatprep.subr.mxu0 %v52
  %275 = vmatpush1.msra.mxu0 %v51
  %276 = vmatprep.subr.mxu0 %v56
  %277 = vmatpush1.msra.mxu0 %v55
  %278 = vmatprep.subr.mxu0 %v60
  %279 = vmatpush1.msra.mxu0 %v59
  %280 = vmatprep.subr.mxu0 %v64
  %281 = vmatpush1.msra.mxu0 %v63
  %282 = vmatprep.subr.mxu0 %v68
  %283 = vmatpush1.msra.mxu0 %v67
  %284 = vmatprep.subr.mxu0 %v72
  %285 = vmatpush1.msra.mxu0 %v71
  %286 = vmatprep.subr.mxu0 0.0
  %287 = vmatpush1.msra.mxu0 0.0
  %288 = vmatprep.subr.mxu0 0.0
  %289 = vmatpush1.msra.mxu0 0.0
  %290 = vmatprep.subr.mxu0 0.0
  %291 = vmatpush1.msra.mxu0 0.0
  %292 = vmatprep.subr.mxu0 0.0
  %293 = vmatpush1.msra.mxu0 0.0
  %294 = vmatprep.subr.mxu0 0.0
  %295 = vmatpush1.msra.mxu0 0.0
  %296 = vmatprep.subr.mxu0 0.0
  %297 = vmatpush1.msra.mxu0 0.0
  %298 = vmatprep.subr.mxu0 0.0
  %299 = vmatpush1.msra.mxu0 0.0
  %300 = vmatprep.subr.mxu0 0.0
  %301 = vmatpush1.msra.mxu0 0.0
  %302 = vmatprep.subr.mxu0 0.0
  %303 = vmatpush1.msra.mxu0 0.0
  %304 = vmatprep.subr.mxu0 0.0
  %305 = vmatpush1.msra.mxu0 0.0
  %306 = vmatprep.subr.mxu0 0.0
  %307 = vmatpush1.msra.mxu0 0.0
  %308 = vmatprep.subr.mxu0 0.0
  %309 = vmatpush1.msra.mxu0 0.0
  %310 = vmatprep.subr.mxu0 0.0
  %311 = vmatpush1.msra.mxu0 0.0
  %312 = vmatprep.subr.mxu0 0.0
  %313 = vmatpush1.msra.mxu0 0.0
  %314 = vmatprep.subr.mxu0 0.0
  %315 = vmatpush1.msra.mxu0 0.0
  %316 = vmatprep.subr.mxu0 0.0
  %317 = vmatpush1.msra.mxu0 0.0
  %318 = vmatprep.mubr.f32.mxu0 0.0
  %319 = vmatmul.mubr.f32.gmra.mrb[0].mxu0 %v248
  %v320 = vpop.f32.mrb[0].mxu0
  %v321 = vadd.f32 0.0, %v320
  %v322 = vpop.f32.mrb[0].mxu0
  %v323 = vadd.f32 0.0, %v322
  %324 = vdwg.mxu0
  %325 = vmatprep.subr.mxu0 %v14
  %326 = vmatpush1.msra.mxu0 %v13
  %327 = vmatprep.subr.mxu0 %v18
  %328 = vmatpush1.msra.mxu0 %v17
  %329 = vmatprep.subr.mxu0 %v22
  %330 = vmatpush1.msra.mxu0 %v21
  %331 = vmatprep.subr.mxu0 %v26
  %332 = vmatpush1.msra.mxu0 %v25
  %333 = vmatprep.subr.mxu0 %v30
  %334 = vmatpush1.msra.mxu0 %v29
  %335 = vmatprep.subr.mxu0 %v34
  %336 = vmatpush1.msra.mxu0 %v33
  %337 = vmatprep.subr.mxu0 %v38
  %338 = vmatpush1.msra.mxu0 %v37
  %339 = vmatprep.subr.mxu0 %v42
  %340 = vmatpush1.msra.mxu0 %v41
  %341 = vmatprep.subr.mxu0 %v46
  %342 = vmatpush1.msra.mxu0 %v45
  %343 = vmatprep.subr.mxu0 %v50
  %344 = vmatpush1.msra.mxu0 %v49
  %345 = vmatprep.subr.mxu0 %v54
  %346 = vmatpush1.msra.mxu0 %v53
  %347 = vmatprep.subr.mxu0 %v58
  %348 = vmatpush1.msra.mxu0 %v57
  %349 = vmatprep.subr.mxu0 %v62
  %350 = vmatpush1.msra.mxu0 %v61
  %351 = vmatprep.subr.mxu0 %v66
  %352 = vmatpush1.msra.mxu0 %v65
  %353 = vmatprep.subr.mxu0 %v70
  %354 = vmatpush1.msra.mxu0 %v69
  %355 = vmatprep.subr.mxu0 %v74
  %356 = vmatpush1.msra.mxu0 %v73
  %357 = vmatprep.subr.mxu0 0.0
  %358 = vmatpush1.msra.mxu0 0.0
  %359 = vmatprep.subr.mxu0 0.0
  %360 = vmatpush1.msra.mxu0 0.0
  %361 = vmatprep.subr.mxu0 0.0
  %362 = vmatpush1.msra.mxu0 0.0
  %363 = vmatprep.subr.mxu0 0.0
  %364 = vmatpush1.msra.mxu0 0.0
  %365 = vmatprep.subr.mxu0 0.0
  %366 = vmatpush1.msra.mxu0 0.0
  %367 = vmatprep.subr.mxu0 0.0
  %368 = vmatpush1.msra.mxu0 0.0
  %369 = vmatprep.subr.mxu0 0.0
  %370 = vmatpush1.msra.mxu0 0.0
  %371 = vmatprep.subr.mxu0 0.0
  %372 = vmatpush1.msra.mxu0 0.0
  %373 = vmatprep.subr.mxu0 0.0
  %374 = vmatpush1.msra.mxu0 0.0
  %375 = vmatprep.subr.mxu0 0.0
  %376 = vmatpush1.msra.mxu0 0.0
  %377 = vmatprep.subr.mxu0 0.0
  %378 = vmatpush1.msra.mxu0 0.0
  %379 = vmatprep.subr.mxu0 0.0
  %380 = vmatpush1.msra.mxu0 0.0
  %381 = vmatprep.subr.mxu0 0.0
  %382 = vmatpush1.msra.mxu0 0.0
  %383 = vmatprep.subr.mxu0 0.0
  %384 = vmatpush1.msra.mxu0 0.0
  %385 = vmatprep.subr.mxu0 0.0
  %386 = vmatpush1.msra.mxu0 0.0
  %387 = vmatprep.subr.mxu0 0.0
  %388 = vmatpush1.msra.mxu0 0.0
  %389 = vmatprep.mubr.f32.mxu0 0.0
  %390 = vmatmul.mubr.f32.gmra.mrb[0].mxu0 %v248
  %v391 = vpop.f32.mrb[0].mxu0
  %v392 = vadd.f32 0.0, %v391
  %v393 = vpop.f32.mrb[0].mxu0
  %v394 = vadd.f32 0.0, %v393
  %395 = vdwg.mxu0
  %v396 = vadd.f32 %v250, %v321
  %v397 = vadd.f32 %v251, %v323
  %v398 = vadd.f32 %v252, %v392
  %v399 = vadd.f32 %v253, %v394
  %v400 = vxor.u32 %v396, 2147483648
  %v401 = vmul.f32 %v400, 1.442695
  %v402 = vpow.pop %v401
  %v403 = vadd.f32 %v402, 1.0
  %v404 = vrcp.pop %v403
  %v405 = vmul.f32 1.0, %v404
  %v406 = vxor.u32 %v397, 2147483648
  %v407 = vmul.f32 %v406, 1.442695
  %v408 = vpow.pop %v407
  %v409 = vadd.f32 %v408, 1.0
  %v410 = vrcp.pop %v409
  %v411 = vmul.f32 1.0, %v410
  %v412 = vtanh.pop %v398
  %v413 = vxor.u32 %v399, 2147483648
  %v414 = vmul.f32 %v413, 1.442695
  %v415 = vpow.pop %v414
  %v416 = vadd.f32 %v415, 1.0
  %v417 = vrcp.pop %v416
  %v418 = vmul.f32 1.0, %v417
  %v419 = vmul.f32 %v411, %v246
  %v420 = vmul.f32 %v405, %v412
  %v421 = vadd.f32 %v419, %v420
  %v422 = vtanh.pop %v421
  %v423 = vmul.f32 %v418, %v422
  %s424 = scalar_lea.vmem %s0, 64
  %v425 = vld [vmem:[%s424] sm:$0xff]
  %v426 = vld [vmem:[%s424 + $0x8] sm:$0xff]
  %v427 = vld [vmem:[%s424 + $0x10] sm:$0xff]
  %v428 = vld [vmem:[%s424 + $0x18] sm:$0xff]
  %429 = vmatprep.subr.mxu0 %v12
  %430 = vmatpush1.msra.mxu0 %v11
  %431 = vmatprep.subr.mxu0 %v16
  %432 = vmatpush1.msra.mxu0 %v15
  %433 = vmatprep.subr.mxu0 %v20
  %434 = vmatpush1.msra.mxu0 %v19
  %435 = vmatprep.subr.mxu0 %v24
  %436 = vmatpush1.msra.mxu0 %v23
  %437 = vmatprep.subr.mxu0 %v28
  %438 = vmatpush1.msra.mxu0 %v27
  %439 = vmatprep.subr.mxu0 %v32
  %440 = vmatpush1.msra.mxu0 %v31
  %441 = vmatprep.subr.mxu0 %v36
  %442 = vmatpush1.msra.mxu0 %v35
  %443 = vmatprep.subr.mxu0 %v40
  %444 = vmatpush1.msra.mxu0 %v39
  %445 = vmatprep.subr.mxu0 %v44
  %446 = vmatpush1.msra.mxu0 %v43
  %447 = vmatprep.subr.mxu0 %v48
  %448 = vmatpush1.msra.mxu0 %v47
  %449 = vmatprep.subr.mxu0 %v52
  %450 = vmatpush1.msra.mxu0 %v51
  %451 = vmatprep.subr.mxu0 %v56
  %452 = vmatpush1.msra.mxu0 %v55
  %453 = vmatprep.subr.mxu0 %v60
  %454 = vmatpush1.msra.mxu0 %v59
  %455 = vmatprep.subr.mxu0 %v64
  %456 = vmatpush1.msra.mxu0 %v63
  %457 = vmatprep.subr.mxu0 %v68
  %458 = vmatpush1.msra.mxu0 %v67
  %459 = vmatprep.subr.mxu0 %v72
  %460 = vmatpush1.msra.mxu0 %v71
  %461 = vmatprep.subr.mxu0 0.0
  %462 = vmatpush1.msra.mxu0 0.0
  %463 = vmatprep.subr.mxu0 0.0
  %464 = vmatpush1.msra.mxu0 0.0
  %465 = vmatprep.subr.mxu0 0.0
  %466 = vmatpush1.msra.mxu0 0.0
  %467 = vmatprep.subr.mxu0 0.0
  %468 = vmatpush1.msra.mxu0 0.0
  %469 = vmatprep.subr.mxu0 0.0
  %470 = vmatpush1.msra.mxu0 0.0
  %471 = vmatprep.subr.mxu0 0.0
  %472 = vmatpush1.msra.mxu0 0.0
  %473 = vmatprep.subr.mxu0 0.0
  %474 = vmatpush1.msra.mxu0 0.0
  %475 = vmatprep.subr.mxu0 0.0
  %476 = vmatpush1.msra.mxu0 0.0
  %477 = vmatprep.subr.mxu0 0.0
  %478 = vmatpush1.msra.mxu0 0.0
  %479 = vmatprep.subr.mxu0 0.0
  %480 = vmatpush1.msra.mxu0 0.0
  %481 = vmatprep.subr.mxu0 0.0
  %482 = vmatpush1.msra.mxu0 0.0
  %483 = vmatprep.subr.mxu0 0.0
  %484 = vmatpush1.msra.mxu0 0.0
  %485 = vmatprep.subr.mxu0 0.0
  %486 = vmatpush1.msra.mxu0 0.0
  %487 = vmatprep.subr.mxu0 0.0
  %488 = vmatpush1.msra.mxu0 0.0
  %489 = vmatprep.subr.mxu0 0.0
  %490 = vmatpush1.msra.mxu0 0.0
  %491 = vmatprep.subr.mxu0 0.0
  %492 = vmatpush1.msra.mxu0 0.0
  %493 = vmatprep.mubr.f32.mxu0 0.0
  %494 = vmatmul.mubr.f32.gmra.mrb[0].mxu0 %v423
  %v495 = vpop.f32.mrb[0].mxu0
  %v496 = vadd.f32 0.0, %v495
  %v497 = vpop.f32.mrb[0].mxu0
  %v498 = vadd.f32 0.0, %v497
  %499 = vdwg.mxu0
  %500 = vmatprep.subr.mxu0 %v14
  %501 = vmatpush1.msra.mxu0 %v13
  %502 = vmatprep.subr.mxu0 %v18
  %503 = vmatpush1.msra.mxu0 %v17
  %504 = vmatprep.subr.mxu0 %v22
  %505 = vmatpush1.msra.mxu0 %v21
  %506 = vmatprep.subr.mxu0 %v26
  %507 = vmatpush1.msra.mxu0 %v25
  %508 = vmatprep.subr.mxu0 %v30
  %509 = vmatpush1.msra.mxu0 %v29
  %510 = vmatprep.subr.mxu0 %v34
  %511 = vmatpush1.msra.mxu0 %v33
  %512 = vmatprep.subr.mxu0 %v38
  %513 = vmatpush1.msra.mxu0 %v37
  %514 = vmatprep.subr.mxu0 %v42
  %515 = vmatpush1.msra.mxu0 %v41
  %516 = vmatprep.subr.mxu0 %v46
  %517 = vmatpush1.msra.mxu0 %v45
  %518 = vmatprep.subr.mxu0 %v50
  %519 = vmatpush1.msra.mxu0 %v49
  %520 = vmatprep.subr.mxu0 %v54
  %521 = vmatpush1.msra.mxu0 %v53
  %522 = vmatprep.subr.mxu0 %v58
  %523 = vmatpush1.msra.mxu0 %v57
  %524 = vmatprep.subr.mxu0 %v62
  %525 = vmatpush1.msra.mxu0 %v61
  %526 = vmatprep.subr.mxu0 %v66
  %527 = vmatpush1.msra.mxu0 %v65
  %528 = vmatprep.subr.mxu0 %v70
  %529 = vmatpush1.msra.mxu0 %v69
  %530 = vmatprep.subr.mxu0 %v74
  %531 = vmatpush1.msra.mxu0 %v73
  %532 = vmatprep.subr.mxu0 0.0
  %533 = vmatpush1.msra.mxu0 0.0
  %534 = vmatprep.subr.mxu0 0.0
  %535 = vmatpush1.msra.mxu0 0.0
  %536 = vmatprep.subr.mxu0 0.0
  %537 = vmatpush1.msra.mxu0 0.0
  %538 = vmatprep.subr.mxu0 0.0
  %539 = vmatpush1.msra.mxu0 0.0
  %540 = vmatprep.subr.mxu0 0.0
  %541 = vmatpush1.msra.mxu0 0.0
  %542 = vmatprep.subr.mxu0 0.0
  %543 = vmatpush1.msra.mxu0 0.0
  %544 = vmatprep.subr.mxu0 0.0
  %545 = vmatpush1.msra.mxu0 0.0
  %546 = vmatprep.subr.mxu0 0.0
  %547 = vmatpush1.msra.mxu0 0.0
  %548 = vmatprep.subr.mxu0 0.0
  %549 = vmatpush1.msra.mxu0 0.0
  %550 = vmatprep.subr.mxu0 0.0
  %551 = vmatpush1.msra.mxu0 0.0
  %552 = vmatprep.subr.mxu0 0.0
  %553 = vmatpush1.msra.mxu0 0.0
  %554 = vmatprep.subr.mxu0 0.0
  %555 = vmatpush1.msra.mxu0 0.0
  %556 = vmatprep.subr.mxu0 0.0
  %557 = vmatpush1.msra.mxu0 0.0
  %558 = vmatprep.subr.mxu0 0.0
  %559 = vmatpush1.msra.mxu0 0.0
  %560 = vmatprep.subr.mxu0 0.0
  %561 = vmatpush1.msra.mxu0 0.0
  %562 = vmatprep.subr.mxu0 0.0
  %563 = vmatpush1.msra.mxu0 0.0
  %564 = vmatprep.mubr.f32.mxu0 0.0
  %565 = vmatmul.mubr.f32.gmra.mrb[0].mxu0 %v423
  %v566 = vpop.f32.mrb[0].mxu0
  %v567 = vadd.f32 0.0, %v566
  %v568 = vpop.f32.mrb[0].mxu0
  %v569 = vadd.f32 0.0, %v568
  %570 = vdwg.mxu0
  %v571 = vadd.f32 %v425, %v496
  %v572 = vadd.f32 %v426, %v498
  %v573 = vadd.f32 %v427, %v567
  %v574 = vadd.f32 %v428, %v569
  %v575 = vxor.u32 %v571, 2147483648
  %v576 = vmul.f32 %v575, 1.442695
  %v577 = vpow.pop %v576
  %v578 = vadd.f32 %v577, 1.0
  %v579 = vrcp.pop %v578
  %v580 = vmul.f32 1.0, %v579
  %v581 = vxor.u32 %v572, 2147483648
  %v582 = vmul.f32 %v581, 1.442695
  %v583 = vpow.pop %v582
  %v584 = vadd.f32 %v583, 1.0
  %v585 = vrcp.pop %v584
  %v586 = vmul.f32 1.0, %v585
  %v587 = vtanh.pop %v573
  %v588 = vxor.u32 %v574, 2147483648
  %v589 = vmul.f32 %v588, 1.442695
  %v590 = vpow.pop %v589
  %v591 = vadd.f32 %v590, 1.0
  %v592 = vrcp.pop %v591
  %v593 = vmul.f32 1.0, %v592
  %v594 = vmul.f32 %v586, %v421
  %v595 = vmul.f32 %v580, %v587
  %v596 = vadd.f32 %v594, %v595
  %v597 = vtanh.pop %v596
  %v598 = vmul.f32 %v593, %v597
  %s599 = scalar_lea.vmem %s0, 96
  %v600 = vld [vmem:[%s599] sm:$0xff]
  %v601 = vld [vmem:[%s599 + $0x8] sm:$0xff]
  %v602 = vld [vmem:[%s599 + $0x10] sm:$0xff]
  %v603 = vld [vmem:[%s599 + $0x18] sm:$0xff]
  %604 = vmatprep.subr.mxu0 %v12
  %605 = vmatpush1.msra.mxu0 %v11
  %606 = vmatprep.subr.mxu0 %v16
  %607 = vmatpush1.msra.mxu0 %v15
  %608 = vmatprep.subr.mxu0 %v20
  %609 = vmatpush1.msra.mxu0 %v19
  %610 = vmatprep.subr.mxu0 %v24
  %611 = vmatpush1.msra.mxu0 %v23
  %612 = vmatprep.subr.mxu0 %v28
  %613 = vmatpush1.msra.mxu0 %v27
  %614 = vmatprep.subr.mxu0 %v32
  %615 = vmatpush1.msra.mxu0 %v31
  %616 = vmatprep.subr.mxu0 %v36
  %617 = vmatpush1.msra.mxu0 %v35
  %618 = vmatprep.subr.mxu0 %v40
  %619 = vmatpush1.msra.mxu0 %v39
  %620 = vmatprep.subr.mxu0 %v44
  %621 = vmatpush1.msra.mxu0 %v43
  %622 = vmatprep.subr.mxu0 %v48
  %623 = vmatpush1.msra.mxu0 %v47
  %624 = vmatprep.subr.mxu0 %v52
  %625 = vmatpush1.msra.mxu0 %v51
  %626 = vmatprep.subr.mxu0 %v56
  %627 = vmatpush1.msra.mxu0 %v55
  %628 = vmatprep.subr.mxu0 %v60
  %629 = vmatpush1.msra.mxu0 %v59
  %630 = vmatprep.subr.mxu0 %v64
  %631 = vmatpush1.msra.mxu0 %v63
  %632 = vmatprep.subr.mxu0 %v68
  %633 = vmatpush1.msra.mxu0 %v67
  %634 = vmatprep.subr.mxu0 %v72
  %635 = vmatpush1.msra.mxu0 %v71
  %636 = vmatprep.subr.mxu0 0.0
  %637 = vmatpush1.msra.mxu0 0.0
  %638 = vmatprep.subr.mxu0 0.0
  %639 = vmatpush1.msra.mxu0 0.0
  %640 = vmatprep.subr.mxu0 0.0
  %641 = vmatpush1.msra.mxu0 0.0
  %642 = vmatprep.subr.mxu0 0.0
  %643 = vmatpush1.msra.mxu0 0.0
  %644 = vmatprep.subr.mxu0 0.0
  %645 = vmatpush1.msra.mxu0 0.0
  %646 = vmatprep.subr.mxu0 0.0
  %647 = vmatpush1.msra.mxu0 0.0
  %648 = vmatprep.subr.mxu0 0.0
  %649 = vmatpush1.msra.mxu0 0.0
  %650 = vmatprep.subr.mxu0 0.0
  %651 = vmatpush1.msra.mxu0 0.0
  %652 = vmatprep.subr.mxu0 0.0
  %653 = vmatpush1.msra.mxu0 0.0
  %654 = vmatprep.subr.mxu0 0.0
  %655 = vmatpush1.msra.mxu0 0.0
  %656 = vmatprep.subr.mxu0 0.0
  %657 = vmatpush1.msra.mxu0 0.0
  %658 = vmatprep.subr.mxu0 0.0
  %659 = vmatpush1.msra.mxu0 0.0
  %660 = vmatprep.subr.mxu0 0.0
  %661 = vmatpush1.msra.mxu0 0.0
  %662 = vmatprep.subr.mxu0 0.0
  %663 = vmatpush1.msra.mxu0 0.0
  %664 = vmatprep.subr.mxu0 0.0
  %665 = vmatpush1.msra.mxu0 0.0
  %666 = vmatprep.subr.mxu0 0.0
  %667 = vmatpush1.msra.mxu0 0.0
  %668 = vmatprep.mubr.f32.mxu0 0.0
  %669 = vmatmul.mubr.f32.gmra.mrb[0].mxu0 %v598
  %v670 = vpop.f32.mrb[0].mxu0
  %v671 = vadd.f32 0.0, %v670
  %v672 = vpop.f32.mrb[0].mxu0
  %v673 = vadd.f32 0.0, %v672
  %674 = vdwg.mxu0
  %675 = vmatprep.subr.mxu0 %v14
  %676 = vmatpush1.msra.mxu0 %v13
  %677 = vmatprep.subr.mxu0 %v18
  %678 = vmatpush1.msra.mxu0 %v17
  %679 = vmatprep.subr.mxu0 %v22
  %680 = vmatpush1.msra.mxu0 %v21
  %681 = vmatprep.subr.mxu0 %v26
  %682 = vmatpush1.msra.mxu0 %v25
  %683 = vmatprep.subr.mxu0 %v30
  %684 = vmatpush1.msra.mxu0 %v29
  %685 = vmatprep.subr.mxu0 %v34
  %686 = vmatpush1.msra.mxu0 %v33
  %687 = vmatprep.subr.mxu0 %v38
  %688 = vmatpush1.msra.mxu0 %v37
  %689 = vmatprep.subr.mxu0 %v42
  %690 = vmatpush1.msra.mxu0 %v41
  %691 = vmatprep.subr.mxu0 %v46
  %692 = vmatpush1.msra.mxu0 %v45
  %693 = vmatprep.subr.mxu0 %v50
  %694 = vmatpush1.msra.mxu0 %v49
  %695 = vmatprep.subr.mxu0 %v54
  %696 = vmatpush1.msra.mxu0 %v53
  %697 = vmatprep.subr.mxu0 %v58
  %698 = vmatpush1.msra.mxu0 %v57
  %699 = vmatprep.subr.mxu0 %v62
  %700 = vmatpush1.msra.mxu0 %v61
  %701 = vmatprep.subr.mxu0 %v66
  %702 = vmatpush1.msra.mxu0 %v65
  %703 = vmatprep.subr.mxu0 %v70
  %704 = vmatpush1.msra.mxu0 %v69
  %705 = vmatprep.subr.mxu0 %v74
  %706 = vmatpush1.msra.mxu0 %v73
  %707 = vmatprep.subr.mxu0 0.0
  %708 = vmatpush1.msra.mxu0 0.0
  %709 = vmatprep.subr.mxu0 0.0
  %710 = vmatpush1.msra.mxu0 0.0
  %711 = vmatprep.subr.mxu0 0.0
  %712 = vmatpush1.msra.mxu0 0.0
  %713 = vmatprep.subr.mxu0 0.0
  %714 = vmatpush1.msra.mxu0 0.0
  %715 = vmatprep.subr.mxu0 0.0
  %716 = vmatpush1.msra.mxu0 0.0
  %717 = vmatprep.subr.mxu0 0.0
  %718 = vmatpush1.msra.mxu0 0.0
  %719 = vmatprep.subr.mxu0 0.0
  %720 = vmatpush1.msra.mxu0 0.0
  %721 = vmatprep.subr.mxu0 0.0
  %722 = vmatpush1.msra.mxu0 0.0
  %723 = vmatprep.subr.mxu0 0.0
  %724 = vmatpush1.msra.mxu0 0.0
  %725 = vmatprep.subr.mxu0 0.0
  %726 = vmatpush1.msra.mxu0 0.0
  %727 = vmatprep.subr.mxu0 0.0
  %728 = vmatpush1.msra.mxu0 0.0
  %729 = vmatprep.subr.mxu0 0.0
  %730 = vmatpush1.msra.mxu0 0.0
  %731 = vmatprep.subr.mxu0 0.0
  %732 = vmatpush1.msra.mxu0 0.0
  %733 = vmatprep.subr.mxu0 0.0
  %734 = vmatpush1.msra.mxu0 0.0
  %735 = vmatprep.subr.mxu0 0.0
  %736 = vmatpush1.msra.mxu0 0.0
  %737 = vmatprep.subr.mxu0 0.0
  %738 = vmatpush1.msra.mxu0 0.0
  %739 = vmatprep.mubr.f32.mxu0 0.0
  %740 = vmatmul.mubr.f32.gmra.mrb[0].mxu0 %v598
  %v741 = vpop.f32.mrb[0].mxu0
  %v742 = vadd.f32 0.0, %v741
  %v743 = vpop.f32.mrb[0].mxu0
  %v744 = vadd.f32 0.0, %v743
  %745 = vdwg.mxu0
  %v746 = vadd.f32 %v600, %v671
  %v747 = vadd.f32 %v601, %v673
  %v748 = vadd.f32 %v602, %v742
  %v749 = vadd.f32 %v603, %v744
  %v750 = vxor.u32 %v746, 2147483648
  %v751 = vmul.f32 %v750, 1.442695
  %v752 = vpow.pop %v751
  %v753 = vadd.f32 %v752, 1.0
  %v754 = vrcp.pop %v753
  %v755 = vmul.f32 1.0, %v754
  %v756 = vxor.u32 %v747, 2147483648
  %v757 = vmul.f32 %v756, 1.442695
  %v758 = vpow.pop %v757
  %v759 = vadd.f32 %v758, 1.0
  %v760 = vrcp.pop %v759
  %v761 = vmul.f32 1.0, %v760
  %v762 = vtanh.pop %v748
  %v763 = vxor.u32 %v749, 2147483648
  %v764 = vmul.f32 %v763, 1.442695
  %v765 = vpow.pop %v764
  %v766 = vadd.f32 %v765, 1.0
  %v767 = vrcp.pop %v766
  %v768 = vmul.f32 1.0, %v767
  %v769 = vmul.f32 %v761, %v596
  %v770 = vmul.f32 %v755, %v762
  %v771 = vadd.f32 %v769, %v770
  %v772 = vtanh.pop %v771
  %v773 = vmul.f32 %v768, %v772
  %s774 = scalar_lea.vmem %s0, 128
  %v775 = vld [vmem:[%s774] sm:$0xff]
  %v776 = vld [vmem:[%s774 + $0x8] sm:$0xff]
  %v777 = vld [vmem:[%s774 + $0x10] sm:$0xff]
  %v778 = vld [vmem:[%s774 + $0x18] sm:$0xff]
  %779 = vmatprep.subr.mxu0 %v12
  %780 = vmatpush1.msra.mxu0 %v11
  %781 = vmatprep.subr.mxu0 %v16
  %782 = vmatpush1.msra.mxu0 %v15
  %783 = vmatprep.subr.mxu0 %v20
  %784 = vmatpush1.msra.mxu0 %v19
  %785 = vmatprep.subr.mxu0 %v24
  %786 = vmatpush1.msra.mxu0 %v23
  %787 = vmatprep.subr.mxu0 %v28
  %788 = vmatpush1.msra.mxu0 %v27
  %789 = vmatprep.subr.mxu0 %v32
  %790 = vmatpush1.msra.mxu0 %v31
  %791 = vmatprep.subr.mxu0 %v36
  %792 = vmatpush1.msra.mxu0 %v35
  %793 = vmatprep.subr.mxu0 %v40
  %794 = vmatpush1.msra.mxu0 %v39
  %795 = vmatprep.subr.mxu0 %v44
  %796 = vmatpush1.msra.mxu0 %v43
  %797 = vmatprep.subr.mxu0 %v48
  %798 = vmatpush1.msra.mxu0 %v47
  %799 = vmatprep.subr.mxu0 %v52
  %800 = vmatpush1.msra.mxu0 %v51
  %801 = vmatprep.subr.mxu0 %v56
  %802 = vmatpush1.msra.mxu0 %v55
  %803 = vmatprep.subr.mxu0 %v60
  %804 = vmatpush1.msra.mxu0 %v59
  %805 = vmatprep.subr.mxu0 %v64
  %806 = vmatpush1.msra.mxu0 %v63
  %807 = vmatprep.subr.mxu0 %v68
  %808 = vmatpush1.msra.mxu0 %v67
  %809 = vmatprep.subr.mxu0 %v72
  %810 = vmatpush1.msra.mxu0 %v71
  %811 = vmatprep.subr.mxu0 0.0
  %812 = vmatpush1.msra.mxu0 0.0
  %813 = vmatprep.subr.mxu0 0.0
  %814 = vmatpush1.msra.mxu0 0.0
  %815 = vmatprep.subr.mxu0 0.0
  %816 = vmatpush1.msra.mxu0 0.0
  %817 = vmatprep.subr.mxu0 0.0
  %818 = vmatpush1.msra.mxu0 0.0
  %819 = vmatprep.subr.mxu0 0.0
  %820 = vmatpush1.msra.mxu0 0.0
  %821 = vmatprep.subr.mxu0 0.0
  %822 = vmatpush1.msra.mxu0 0.0
  %823 = vmatprep.subr.mxu0 0.0
  %824 = vmatpush1.msra.mxu0 0.0
  %825 = vmatprep.subr.mxu0 0.0
  %826 = vmatpush1.msra.mxu0 0.0
  %827 = vmatprep.subr.mxu0 0.0
  %828 = vmatpush1.msra.mxu0 0.0
  %829 = vmatprep.subr.mxu0 0.0
  %830 = vmatpush1.msra.mxu0 0.0
  %831 = vmatprep.subr.mxu0 0.0
  %832 = vmatpush1.msra.mxu0 0.0
  %833 = vmatprep.subr.mxu0 0.0
  %834 = vmatpush1.msra.mxu0 0.0
  %835 = vmatprep.subr.mxu0 0.0
  %836 = vmatpush1.msra.mxu0 0.0
  %837 = vmatprep.subr.mxu0 0.0
  %838 = vmatpush1.msra.mxu0 0.0
  %839 = vmatprep.subr.mxu0 0.0
  %840 = vmatpush1.msra.mxu0 0.0
  %841 = vmatprep.subr.mxu0 0.0
  %842 = vmatpush1.msra.mxu0 0.0
  %843 = vmatprep.mubr.f32.mxu0 0.0
  %844 = vmatmul.mubr.f32.gmra.mrb[0].mxu0 %v773
  %v845 = vpop.f32.mrb[0].mxu0
  %v846 = vadd.f32 0.0, %v845
  %v847 = vpop.f32.mrb[0].mxu0
  %v848 = vadd.f32 0.0, %v847
  %849 = vdwg.mxu0
  %850 = vmatprep.subr.mxu0 %v14
  %851 = vmatpush1.msra.mxu0 %v13
  %852 = vmatprep.subr.mxu0 %v18
  %853 = vmatpush1.msra.mxu0 %v17
  %854 = vmatprep.subr.mxu0 %v22
  %855 = vmatpush1.msra.mxu0 %v21
  %856 = vmatprep.subr.mxu0 %v26
  %857 = vmatpush1.msra.mxu0 %v25
  %858 = vmatprep.subr.mxu0 %v30
  %859 = vmatpush1.msra.mxu0 %v29
  %860 = vmatprep.subr.mxu0 %v34
  %861 = vmatpush1.msra.mxu0 %v33
  %862 = vmatprep.subr.mxu0 %v38
  %863 = vmatpush1.msra.mxu0 %v37
  %864 = vmatprep.subr.mxu0 %v42
  %865 = vmatpush1.msra.mxu0 %v41
  %866 = vmatprep.subr.mxu0 %v46
  %867 = vmatpush1.msra.mxu0 %v45
  %868 = vmatprep.subr.mxu0 %v50
  %869 = vmatpush1.msra.mxu0 %v49
  %870 = vmatprep.subr.mxu0 %v54
  %871 = vmatpush1.msra.mxu0 %v53
  %872 = vmatprep.subr.mxu0 %v58
  %873 = vmatpush1.msra.mxu0 %v57
  %874 = vmatprep.subr.mxu0 %v62
  %875 = vmatpush1.msra.mxu0 %v61
  %876 = vmatprep.subr.mxu0 %v66
  %877 = vmatpush1.msra.mxu0 %v65
  %878 = vmatprep.subr.mxu0 %v70
  %879 = vmatpush1.msra.mxu0 %v69
  %880 = vmatprep.subr.mxu0 %v74
  %881 = vmatpush1.msra.mxu0 %v73
  %882 = vmatprep.subr.mxu0 0.0
  %883 = vmatpush1.msra.mxu0 0.0
  %884 = vmatprep.subr.mxu0 0.0
  %885 = vmatpush1.msra.mxu0 0.0
  %886 = vmatprep.subr.mxu0 0.0
  %887 = vmatpush1.msra.mxu0 0.0
  %888 = vmatprep.subr.mxu0 0.0
  %889 = vmatpush1.msra.mxu0 0.0
  %890 = vmatprep.subr.mxu0 0.0
  %891 = vmatpush1.msra.mxu0 0.0
  %892 = vmatprep.subr.mxu0 0.0
  %893 = vmatpush1.msra.mxu0 0.0
  %894 = vmatprep.subr.mxu0 0.0
  %895 = vmatpush1.msra.mxu0 0.0
  %896 = vmatprep.subr.mxu0 0.0
  %897 = vmatpush1.msra.mxu0 0.0
  %898 = vmatprep.subr.mxu0 0.0
  %899 = vmatpush1.msra.mxu0 0.0
  %900 = vmatprep.subr.mxu0 0.0
  %901 = vmatpush1.msra.mxu0 0.0
  %902 = vmatprep.subr.mxu0 0.0
  %903 = vmatpush1.msra.mxu0 0.0
  %904 = vmatprep.subr.mxu0 0.0
  %905 = vmatpush1.msra.mxu0 0.0
  %906 = vmatprep.subr.mxu0 0.0
  %907 = vmatpush1.msra.mxu0 0.0
  %908 = vmatprep.subr.mxu0 0.0
  %909 = vmatpush1.msra.mxu0 0.0
  %910 = vmatprep.subr.mxu0 0.0
  %911 = vmatpush1.msra.mxu0 0.0
  %912 = vmatprep.subr.mxu0 0.0
  %913 = vmatpush1.msra.mxu0 0.0
  %914 = vmatprep.mubr.f32.mxu0 0.0
  %915 = vmatmul.mubr.f32.gmra.mrb[0].mxu0 %v773
  %v916 = vpop.f32.mrb[0].mxu0
  %v917 = vadd.f32 0.0, %v916
  %v918 = vpop.f32.mrb[0].mxu0
  %v919 = vadd.f32 0.0, %v918
  %920 = vdwg.mxu0
  %v921 = vadd.f32 %v775, %v846
  %v922 = vadd.f32 %v776, %v848
  %v923 = vadd.f32 %v777, %v917
  %v924 = vadd.f32 %v778, %v919
  %v925 = vxor.u32 %v921, 2147483648
  %v926 = vmul.f32 %v925, 1.442695
  %v927 = vpow.pop %v926
  %v928 = vadd.f32 %v927, 1.0
  %v929 = vrcp.pop %v928
  %v930 = vmul.f32 1.0, %v929
  %v931 = vxor.u32 %v922, 2147483648
  %v932 = vmul.f32 %v931, 1.442695
  %v933 = vpow.pop %v932
  %v934 = vadd.f32 %v933, 1.0
  %v935 = vrcp.pop %v934
  %v936 = vmul.f32 1.0, %v935
  %v937 = vtanh.pop %v923
  %v938 = vxor.u32 %v924, 2147483648
  %v939 = vmul.f32 %v938, 1.442695
  %v940 = vpow.pop %v939
  %v941 = vadd.f32 %v940, 1.0
  %v942 = vrcp.pop %v941
  %v943 = vmul.f32 1.0, %v942
  %v944 = vmul.f32 %v936, %v771
  %v945 = vmul.f32 %v930, %v937
  %v946 = vadd.f32 %v944, %v945
  %v947 = vtanh.pop %v946
  %v948 = vmul.f32 %v943, %v947
  %s949 = scalar_lea.vmem %s0, 160
  %v950 = vld [vmem:[%s949] sm:$0xff]
  %v951 = vld [vmem:[%s949 + $0x8] sm:$0xff]
  %v952 = vld [vmem:[%s949 + $0x10] sm:$0xff]
  %v953 = vld [vmem:[%s949 + $0x18] sm:$0xff]
  %954 = vmatprep.subr.mxu0 %v12
  %955 = vmatpush1.msra.mxu0 %v11
  %956 = vmatprep.subr.mxu0 %v16
  %957 = vmatpush1.msra.mxu0 %v15
  %958 = vmatprep.subr.mxu0 %v20
  %959 = vmatpush1.msra.mxu0 %v19
  %960 = vmatprep.subr.mxu0 %v24
  %961 = vmatpush1.msra.mxu0 %v23
  %962 = vmatprep.subr.mxu0 %v28
  %963 = vmatpush1.msra.mxu0 %v27
  %964 = vmatprep.subr.mxu0 %v32
  %965 = vmatpush1.msra.mxu0 %v31
  %966 = vmatprep.subr.mxu0 %v36
  %967 = vmatpush1.msra.mxu0 %v35
  %968 = vmatprep.subr.mxu0 %v40
  %969 = vmatpush1.msra.mxu0 %v39
  %970 = vmatprep.subr.mxu0 %v44
  %971 = vmatpush1.msra.mxu0 %v43
  %972 = vmatprep.subr.mxu0 %v48
  %973 = vmatpush1.msra.mxu0 %v47
  %974 = vmatprep.subr.mxu0 %v52
  %975 = vmatpush1.msra.mxu0 %v51
  %976 = vmatprep.subr.mxu0 %v56
  %977 = vmatpush1.msra.mxu0 %v55
  %978 = vmatprep.subr.mxu0 %v60
  %979 = vmatpush1.msra.mxu0 %v59
  %980 = vmatprep.subr.mxu0 %v64
  %981 = vmatpush1.msra.mxu0 %v63
  %982 = vmatprep.subr.mxu0 %v68
  %983 = vmatpush1.msra.mxu0 %v67
  %984 = vmatprep.subr.mxu0 %v72
  %985 = vmatpush1.msra.mxu0 %v71
  %986 = vmatprep.subr.mxu0 0.0
  %987 = vmatpush1.msra.mxu0 0.0
  %988 = vmatprep.subr.mxu0 0.0
  %989 = vmatpush1.msra.mxu0 0.0
  %990 = vmatprep.subr.mxu0 0.0
  %991 = vmatpush1.msra.mxu0 0.0
  %992 = vmatprep.subr.mxu0 0.0
  %993 = vmatpush1.msra.mxu0 0.0
  %994 = vmatprep.subr.mxu0 0.0
  %995 = vmatpush1.msra.mxu0 0.0
  %996 = vmatprep.subr.mxu0 0.0
  %997 = vmatpush1.msra.mxu0 0.0
  %998 = vmatprep.subr.mxu0 0.0
  %999 = vmatpush1.msra.mxu0 0.0
  %1000 = vmatprep.subr.mxu0 0.0
  %1001 = vmatpush1.msra.mxu0 0.0
  %1002 = vmatprep.subr.mxu0 0.0
  %1003 = vmatpush1.msra.mxu0 0.0
  %1004 = vmatprep.subr.mxu0 0.0
  %1005 = vmatpush1.msra.mxu0 0.0
  %1006 = vmatprep.subr.mxu0 0.0
  %1007 = vmatpush1.msra.mxu0 0.0
  %1008 = vmatprep.subr.mxu0 0.0
  %1009 = vmatpush1.msra.mxu0 0.0
  %1010 = vmatprep.subr.mxu0 0.0
  %1011 = vmatpush1.msra.mxu0 0.0
  %1012 = vmatprep.subr.mxu0 0.0
  %1013 = vmatpush1.msra.mxu0 0.0
  %1014 = vmatprep.subr.mxu0 0.0
  %1015 = vmatpush1.msra.mxu0 0.0
  %1016 = vmatprep.subr.mxu0 0.0
  %1017 = vmatpush1.msra.mxu0 0.0
  %1018 = vmatprep.mubr.f32.mxu0 0.0
  %1019 = vmatmul.mubr.f32.gmra.mrb[0].mxu0 %v948
  %v1020 = vpop.f32.mrb[0].mxu0
  %v1021 = vadd.f32 0.0, %v1020
  %v1022 = vpop.f32.mrb[0].mxu0
  %v1023 = vadd.f32 0.0, %v1022
  %1024 = vdwg.mxu0
  %1025 = vmatprep.subr.mxu0 %v14
  %1026 = vmatpush1.msra.mxu0 %v13
  %1027 = vmatprep.subr.mxu0 %v18
  %1028 = vmatpush1.msra.mxu0 %v17
  %1029 = vmatprep.subr.mxu0 %v22
  %1030 = vmatpush1.msra.mxu0 %v21
  %1031 = vmatprep.subr.mxu0 %v26
  %1032 = vmatpush1.msra.mxu0 %v25
  %1033 = vmatprep.subr.mxu0 %v30
  %1034 = vmatpush1.msra.mxu0 %v29
  %1035 = vmatprep.subr.mxu0 %v34
  %1036 = vmatpush1.msra.mxu0 %v33
  %1037 = vmatprep.subr.mxu0 %v38
  %1038 = vmatpush1.msra.mxu0 %v37
  %1039 = vmatprep.subr.mxu0 %v42
  %1040 = vmatpush1.msra.mxu0 %v41
  %1041 = vmatprep.subr.mxu0 %v46
  %1042 = vmatpush1.msra.mxu0 %v45
  %1043 = vmatprep.subr.mxu0 %v50
  %1044 = vmatpush1.msra.mxu0 %v49
  %1045 = vmatprep.subr.mxu0 %v54
  %1046 = vmatpush1.msra.mxu0 %v53
  %1047 = vmatprep.subr.mxu0 %v58
  %1048 = vmatpush1.msra.mxu0 %v57
  %1049 = vmatprep.subr.mxu0 %v62
  %1050 = vmatpush1.msra.mxu0 %v61
  %1051 = vmatprep.subr.mxu0 %v66
  %1052 = vmatpush1.msra.mxu0 %v65
  %1053 = vmatprep.subr.mxu0 %v70
  %1054 = vmatpush1.msra.mxu0 %v69
  %1055 = vmatprep.subr.mxu0 %v74
  %1056 = vmatpush1.msra.mxu0 %v73
  %1057 = vmatprep.subr.mxu0 0.0
  %1058 = vmatpush1.msra.mxu0 0.0
  %1059 = vmatprep.subr.mxu0 0.0
  %1060 = vmatpush1.msra.mxu0 0.0
  %1061 = vmatprep.subr.mxu0 0.0
  %1062 = vmatpush1.msra.mxu0 0.0
  %1063 = vmatprep.subr.mxu0 0.0
  %1064 = vmatpush1.msra.mxu0 0.0
  %1065 = vmatprep.subr.mxu0 0.0
  %1066 = vmatpush1.msra.mxu0 0.0
  %1067 = vmatprep.subr.mxu0 0.0
  %1068 = vmatpush1.msra.mxu0 0.0
  %1069 = vmatprep.subr.mxu0 0.0
  %1070 = vmatpush1.msra.mxu0 0.0
  %1071 = vmatprep.subr.mxu0 0.0
  %1072 = vmatpush1.msra.mxu0 0.0
  %1073 = vmatprep.subr.mxu0 0.0
  %1074 = vmatpush1.msra.mxu0 0.0
  %1075 = vmatprep.subr.mxu0 0.0
  %1076 = vmatpush1.msra.mxu0 0.0
  %1077 = vmatprep.subr.mxu0 0.0
  %1078 = vmatpush1.msra.mxu0 0.0
  %1079 = vmatprep.subr.mxu0 0.0
  %1080 = vmatpush1.msra.mxu0 0.0
  %1081 = vmatprep.subr.mxu0 0.0
  %1082 = vmatpush1.msra.mxu0 0.0
  %1083 = vmatprep.subr.mxu0 0.0
  %1084 = vmatpush1.msra.mxu0 0.0
  %1085 = vmatprep.subr.mxu0 0.0
  %1086 = vmatpush1.msra.mxu0 0.0
  %1087 = vmatprep.subr.mxu0 0.0
  %1088 = vmatpush1.msra.mxu0 0.0
  %1089 = vmatprep.mubr.f32.mxu0 0.0
  %1090 = vmatmul.mubr.f32.gmra.mrb[0].mxu0 %v948
  %v1091 = vpop.f32.mrb[0].mxu0
  %v1092 = vadd.f32 0.0, %v1091
  %v1093 = vpop.f32.mrb[0].mxu0
  %v1094 = vadd.f32 0.0, %v1093
  %1095 = vdwg.mxu0
  %v1096 = vadd.f32 %v950, %v1021
  %v1097 = vadd.f32 %v951, %v1023
  %v1098 = vadd.f32 %v952, %v1092
  %v1099 = vadd.f32 %v953, %v1094
  %v1100 = vxor.u32 %v1096, 2147483648
  %v1101 = vmul.f32 %v1100, 1.442695
  %v1102 = vpow.pop %v1101
  %v1103 = vadd.f32 %v1102, 1.0
  %v1104 = vrcp.pop %v1103
  %v1105 = vmul.f32 1.0, %v1104
  %v1106 = vxor.u32 %v1097, 2147483648
  %v1107 = vmul.f32 %v1106, 1.442695
  %v1108 = vpow.pop %v1107
  %v1109 = vadd.f32 %v1108, 1.0
  %v1110 = vrcp.pop %v1109
  %v1111 = vmul.f32 1.0, %v1110
  %v1112 = vtanh.pop %v1098
  %v1113 = vxor.u32 %v1099, 2147483648
  %v1114 = vmul.f32 %v1113, 1.442695
  %v1115 = vpow.pop %v1114
  %v1116 = vadd.f32 %v1115, 1.0
  %v1117 = vrcp.pop %v1116
  %v1118 = vmul.f32 1.0, %v1117
  %v1119 = vmul.f32 %v1111, %v946
  %v1120 = vmul.f32 %v1105, %v1112
  %v1121 = vadd.f32 %v1119, %v1120
  %v1122 = vtanh.pop %v1121
  %v1123 = vmul.f32 %v1118, %v1122
  %s1124 = scalar_lea.vmem %s0, 192
  %v1125 = vld [vmem:[%s1124] sm:$0xff]
  %v1126 = vld [vmem:[%s1124 + $0x8] sm:$0xff]
  %v1127 = vld [vmem:[%s1124 + $0x10] sm:$0xff]
  %v1128 = vld [vmem:[%s1124 + $0x18] sm:$0xff]
  %1129 = vmatprep.subr.mxu0 %v12
  %1130 = vmatpush1.msra.mxu0 %v11
  %1131 = vmatprep.subr.mxu0 %v16
  %1132 = vmatpush1.msra.mxu0 %v15
  %1133 = vmatprep.subr.mxu0 %v20
  %1134 = vmatpush1.msra.mxu0 %v19
  %1135 = vmatprep.subr.mxu0 %v24
  %1136 = vmatpush1.msra.mxu0 %v23
  %1137 = vmatprep.subr.mxu0 %v28
  %1138 = vmatpush1.msra.mxu0 %v27
  %1139 = vmatprep.subr.mxu0 %v32
  %1140 = vmatpush1.msra.mxu0 %v31
  %1141 = vmatprep.subr.mxu0 %v36
  %1142 = vmatpush1.msra.mxu0 %v35
  %1143 = vmatprep.subr.mxu0 %v40
  %1144 = vmatpush1.msra.mxu0 %v39
  %1145 = vmatprep.subr.mxu0 %v44
  %1146 = vmatpush1.msra.mxu0 %v43
  %1147 = vmatprep.subr.mxu0 %v48
  %1148 = vmatpush1.msra.mxu0 %v47
  %1149 = vmatprep.subr.mxu0 %v52
  %1150 = vmatpush1.msra.mxu0 %v51
  %1151 = vmatprep.subr.mxu0 %v56
  %1152 = vmatpush1.msra.mxu0 %v55
  %1153 = vmatprep.subr.mxu0 %v60
  %1154 = vmatpush1.msra.mxu0 %v59
  %1155 = vmatprep.subr.mxu0 %v64
  %1156 = vmatpush1.msra.mxu0 %v63
  %1157 = vmatprep.subr.mxu0 %v68
  %1158 = vmatpush1.msra.mxu0 %v67
  %1159 = vmatprep.subr.mxu0 %v72
  %1160 = vmatpush1.msra.mxu0 %v71
  %1161 = vmatprep.subr.mxu0 0.0
  %1162 = vmatpush1.msra.mxu0 0.0
  %1163 = vmatprep.subr.mxu0 0.0
  %1164 = vmatpush1.msra.mxu0 0.0
  %1165 = vmatprep.subr.mxu0 0.0
  %1166 = vmatpush1.msra.mxu0 0.0
  %1167 = vmatprep.subr.mxu0 0.0
  %1168 = vmatpush1.msra.mxu0 0.0
  %1169 = vmatprep.subr.mxu0 0.0
  %1170 = vmatpush1.msra.mxu0 0.0
  %1171 = vmatprep.subr.mxu0 0.0
  %1172 = vmatpush1.msra.mxu0 0.0
  %1173 = vmatprep.subr.mxu0 0.0
  %1174 = vmatpush1.msra.mxu0 0.0
  %1175 = vmatprep.subr.mxu0 0.0
  %1176 = vmatpush1.msra.mxu0 0.0
  %1177 = vmatprep.subr.mxu0 0.0
  %1178 = vmatpush1.msra.mxu0 0.0
  %1179 = vmatprep.subr.mxu0 0.0
  %1180 = vmatpush1.msra.mxu0 0.0
  %1181 = vmatprep.subr.mxu0 0.0
  %1182 = vmatpush1.msra.mxu0 0.0
  %1183 = vmatprep.subr.mxu0 0.0
  %1184 = vmatpush1.msra.mxu0 0.0
  %1185 = vmatprep.subr.mxu0 0.0
  %1186 = vmatpush1.msra.mxu0 0.0
  %1187 = vmatprep.subr.mxu0 0.0
  %1188 = vmatpush1.msra.mxu0 0.0
  %1189 = vmatprep.subr.mxu0 0.0
  %1190 = vmatpush1.msra.mxu0 0.0
  %1191 = vmatprep.subr.mxu0 0.0
  %1192 = vmatpush1.msra.mxu0 0.0
  %1193 = vmatprep.mubr.f32.mxu0 0.0
  %1194 = vmatmul.mubr.f32.gmra.mrb[0].mxu0 %v1123
  %v1195 = vpop.f32.mrb[0].mxu0
  %v1196 = vadd.f32 0.0, %v1195
  %v1197 = vpop.f32.mrb[0].mxu0
  %v1198 = vadd.f32 0.0, %v1197
  %1199 = vdwg.mxu0
  %1200 = vmatprep.subr.mxu0 %v14
  %1201 = vmatpush1.msra.mxu0 %v13
  %1202 = vmatprep.subr.mxu0 %v18
  %1203 = vmatpush1.msra.mxu0 %v17
  %1204 = vmatprep.subr.mxu0 %v22
  %1205 = vmatpush1.msra.mxu0 %v21
  %1206 = vmatprep.subr.mxu0 %v26
  %1207 = vmatpush1.msra.mxu0 %v25
  %1208 = vmatprep.subr.mxu0 %v30
  %1209 = vmatpush1.msra.mxu0 %v29
  %1210 = vmatprep.subr.mxu0 %v34
  %1211 = vmatpush1.msra.mxu0 %v33
  %1212 = vmatprep.subr.mxu0 %v38
  %1213 = vmatpush1.msra.mxu0 %v37
  %1214 = vmatprep.subr.mxu0 %v42
  %1215 = vmatpush1.msra.mxu0 %v41
  %1216 = vmatprep.subr.mxu0 %v46
  %1217 = vmatpush1.msra.mxu0 %v45
  %1218 = vmatprep.subr.mxu0 %v50
  %1219 = vmatpush1.msra.mxu0 %v49
  %1220 = vmatprep.subr.mxu0 %v54
  %1221 = vmatpush1.msra.mxu0 %v53
  %1222 = vmatprep.subr.mxu0 %v58
  %1223 = vmatpush1.msra.mxu0 %v57
  %1224 = vmatprep.subr.mxu0 %v62
  %1225 = vmatpush1.msra.mxu0 %v61
  %1226 = vmatprep.subr.mxu0 %v66
  %1227 = vmatpush1.msra.mxu0 %v65
  %1228 = vmatprep.subr.mxu0 %v70
  %1229 = vmatpush1.msra.mxu0 %v69
  %1230 = vmatprep.subr.mxu0 %v74
  %1231 = vmatpush1.msra.mxu0 %v73
  %1232 = vmatprep.subr.mxu0 0.0
  %1233 = vmatpush1.msra.mxu0 0.0
  %1234 = vmatprep.subr.mxu0 0.0
  %1235 = vmatpush1.msra.mxu0 0.0
  %1236 = vmatprep.subr.mxu0 0.0
  %1237 = vmatpush1.msra.mxu0 0.0
  %1238 = vmatprep.subr.mxu0 0.0
  %1239 = vmatpush1.msra.mxu0 0.0
  %1240 = vmatprep.subr.mxu0 0.0
  %1241 = vmatpush1.msra.mxu0 0.0
  %1242 = vmatprep.subr.mxu0 0.0
  %1243 = vmatpush1.msra.mxu0 0.0
  %1244 = vmatprep.subr.mxu0 0.0
  %1245 = vmatpush1.msra.mxu0 0.0
  %1246 = vmatprep.subr.mxu0 0.0
  %1247 = vmatpush1.msra.mxu0 0.0
  %1248 = vmatprep.subr.mxu0 0.0
  %1249 = vmatpush1.msra.mxu0 0.0
  %1250 = vmatprep.subr.mxu0 0.0
  %1251 = vmatpush1.msra.mxu0 0.0
  %1252 = vmatprep.subr.mxu0 0.0
  %1253 = vmatpush1.msra.mxu0 0.0
  %1254 = vmatprep.subr.mxu0 0.0
  %1255 = vmatpush1.msra.mxu0 0.0
  %1256 = vmatprep.subr.mxu0 0.0
  %1257 = vmatpush1.msra.mxu0 0.0
  %1258 = vmatprep.subr.mxu0 0.0
  %1259 = vmatpush1.msra.mxu0 0.0
  %1260 = vmatprep.subr.mxu0 0.0
  %1261 = vmatpush1.msra.mxu0 0.0
  %1262 = vmatprep.subr.mxu0 0.0
  %1263 = vmatpush1.msra.mxu0 0.0
  %1264 = vmatprep.mubr.f32.mxu0 0.0
  %1265 = vmatmul.mubr.f32.gmra.mrb[0].mxu0 %v1123
  %v1266 = vpop.f32.mrb[0].mxu0
  %v1267 = vadd.f32 0.0, %v1266
  %v1268 = vpop.f32.mrb[0].mxu0
  %v1269 = vadd.f32 0.0, %v1268
  %1270 = vdwg.mxu0
  %v1271 = vadd.f32 %v1125, %v1196
  %v1272 = vadd.f32 %v1126, %v1198
  %v1273 = vadd.f32 %v1127, %v1267
  %v1274 = vadd.f32 %v1128, %v1269
  %v1275 = vxor.u32 %v1271, 2147483648
  %v1276 = vmul.f32 %v1275, 1.442695
  %v1277 = vpow.pop %v1276
  %v1278 = vadd.f32 %v1277, 1.0
  %v1279 = vrcp.pop %v1278
  %v1280 = vmul.f32 1.0, %v1279
  %v1281 = vxor.u32 %v1272, 2147483648
  %v1282 = vmul.f32 %v1281, 1.442695
  %v1283 = vpow.pop %v1282
  %v1284 = vadd.f32 %v1283, 1.0
  %v1285 = vrcp.pop %v1284
  %v1286 = vmul.f32 1.0, %v1285
  %v1287 = vtanh.pop %v1273
  %v1288 = vxor.u32 %v1274, 2147483648
  %v1289 = vmul.f32 %v1288, 1.442695
  %v1290 = vpow.pop %v1289
  %v1291 = vadd.f32 %v1290, 1.0
  %v1292 = vrcp.pop %v1291
  %v1293 = vmul.f32 1.0, %v1292
  %v1294 = vmul.f32 %v1286, %v1121
  %v1295 = vmul.f32 %v1280, %v1287
  %v1296 = vadd.f32 %v1294, %v1295
  %v1297 = vtanh.pop %v1296
  %v1298 = vmul.f32 %v1293, %v1297
  %s1299 = scalar_lea.vmem %s0, 224
  %v1300 = vld [vmem:[%s1299] sm:$0xff]
  %v1301 = vld [vmem:[%s1299 + $0x8] sm:$0xff]
  %v1302 = vld [vmem:[%s1299 + $0x10] sm:$0xff]
  %v1303 = vld [vmem:[%s1299 + $0x18] sm:$0xff]
  %1304 = vmatprep.subr.mxu0 %v12
  %1305 = vmatpush1.msra.mxu0 %v11
  %1306 = vmatprep.subr.mxu0 %v16
  %1307 = vmatpush1.msra.mxu0 %v15
  %1308 = vmatprep.subr.mxu0 %v20
  %1309 = vmatpush1.msra.mxu0 %v19
  %1310 = vmatprep.subr.mxu0 %v24
  %1311 = vmatpush1.msra.mxu0 %v23
  %1312 = vmatprep.subr.mxu0 %v28
  %1313 = vmatpush1.msra.mxu0 %v27
  %1314 = vmatprep.subr.mxu0 %v32
  %1315 = vmatpush1.msra.mxu0 %v31
  %1316 = vmatprep.subr.mxu0 %v36
  %1317 = vmatpush1.msra.mxu0 %v35
  %1318 = vmatprep.subr.mxu0 %v40
  %1319 = vmatpush1.msra.mxu0 %v39
  %1320 = vmatprep.subr.mxu0 %v44
  %1321 = vmatpush1.msra.mxu0 %v43
  %1322 = vmatprep.subr.mxu0 %v48
  %1323 = vmatpush1.msra.mxu0 %v47
  %1324 = vmatprep.subr.mxu0 %v52
  %1325 = vmatpush1.msra.mxu0 %v51
  %1326 = vmatprep.subr.mxu0 %v56
  %1327 = vmatpush1.msra.mxu0 %v55
  %1328 = vmatprep.subr.mxu0 %v60
  %1329 = vmatpush1.msra.mxu0 %v59
  %1330 = vmatprep.subr.mxu0 %v64
  %1331 = vmatpush1.msra.mxu0 %v63
  %1332 = vmatprep.subr.mxu0 %v68
  %1333 = vmatpush1.msra.mxu0 %v67
  %1334 = vmatprep.subr.mxu0 %v72
  %1335 = vmatpush1.msra.mxu0 %v71
  %1336 = vmatprep.subr.mxu0 0.0
  %1337 = vmatpush1.msra.mxu0 0.0
  %1338 = vmatprep.subr.mxu0 0.0
  %1339 = vmatpush1.msra.mxu0 0.0
  %1340 = vmatprep.subr.mxu0 0.0
  %1341 = vmatpush1.msra.mxu0 0.0
  %1342 = vmatprep.subr.mxu0 0.0
  %1343 = vmatpush1.msra.mxu0 0.0
  %1344 = vmatprep.subr.mxu0 0.0
  %1345 = vmatpush1.msra.mxu0 0.0
  %1346 = vmatprep.subr.mxu0 0.0
  %1347 = vmatpush1.msra.mxu0 0.0
  %1348 = vmatprep.subr.mxu0 0.0
  %1349 = vmatpush1.msra.mxu0 0.0
  %1350 = vmatprep.subr.mxu0 0.0
  %1351 = vmatpush1.msra.mxu0 0.0
  %1352 = vmatprep.subr.mxu0 0.0
  %1353 = vmatpush1.msra.mxu0 0.0
  %1354 = vmatprep.subr.mxu0 0.0
  %1355 = vmatpush1.msra.mxu0 0.0
  %1356 = vmatprep.subr.mxu0 0.0
  %1357 = vmatpush1.msra.mxu0 0.0
  %1358 = vmatprep.subr.mxu0 0.0
  %1359 = vmatpush1.msra.mxu0 0.0
  %1360 = vmatprep.subr.mxu0 0.0
  %1361 = vmatpush1.msra.mxu0 0.0
  %1362 = vmatprep.subr.mxu0 0.0
  %1363 = vmatpush1.msra.mxu0 0.0
  %1364 = vmatprep.subr.mxu0 0.0
  %1365 = vmatpush1.msra.mxu0 0.0
  %1366 = vmatprep.subr.mxu0 0.0
  %1367 = vmatpush1.msra.mxu0 0.0
  %1368 = vmatprep.mubr.f32.mxu0 0.0
  %1369 = vmatmul.mubr.f32.gmra.mrb[0].mxu0 %v1298
  %v1370 = vpop.f32.mrb[0].mxu0
  %v1371 = vadd.f32 0.0, %v1370
  %v1372 = vpop.f32.mrb[0].mxu0
  %v1373 = vadd.f32 0.0, %v1372
  %1374 = vdwg.mxu0
  %1375 = vmatprep.subr.mxu0 %v14
  %1376 = vmatpush1.msra.mxu0 %v13
  %1377 = vmatprep.subr.mxu0 %v18
  %1378 = vmatpush1.msra.mxu0 %v17
  %1379 = vmatprep.subr.mxu0 %v22
  %1380 = vmatpush1.msra.mxu0 %v21
  %1381 = vmatprep.subr.mxu0 %v26
  %1382 = vmatpush1.msra.mxu0 %v25
  %1383 = vmatprep.subr.mxu0 %v30
  %1384 = vmatpush1.msra.mxu0 %v29
  %1385 = vmatprep.subr.mxu0 %v34
  %1386 = vmatpush1.msra.mxu0 %v33
  %1387 = vmatprep.subr.mxu0 %v38
  %1388 = vmatpush1.msra.mxu0 %v37
  %1389 = vmatprep.subr.mxu0 %v42
  %1390 = vmatpush1.msra.mxu0 %v41
  %1391 = vmatprep.subr.mxu0 %v46
  %1392 = vmatpush1.msra.mxu0 %v45
  %1393 = vmatprep.subr.mxu0 %v50
  %1394 = vmatpush1.msra.mxu0 %v49
  %1395 = vmatprep.subr.mxu0 %v54
  %1396 = vmatpush1.msra.mxu0 %v53
  %1397 = vmatprep.subr.mxu0 %v58
  %1398 = vmatpush1.msra.mxu0 %v57
  %1399 = vmatprep.subr.mxu0 %v62
  %1400 = vmatpush1.msra.mxu0 %v61
  %1401 = vmatprep.subr.mxu0 %v66
  %1402 = vmatpush1.msra.mxu0 %v65
  %1403 = vmatprep.subr.mxu0 %v70
  %1404 = vmatpush1.msra.mxu0 %v69
  %1405 = vmatprep.subr.mxu0 %v74
  %1406 = vmatpush1.msra.mxu0 %v73
  %1407 = vmatprep.subr.mxu0 0.0
  %1408 = vmatpush1.msra.mxu0 0.0
  %1409 = vmatprep.subr.mxu0 0.0
  %1410 = vmatpush1.msra.mxu0 0.0
  %1411 = vmatprep.subr.mxu0 0.0
  %1412 = vmatpush1.msra.mxu0 0.0
  %1413 = vmatprep.subr.mxu0 0.0
  %1414 = vmatpush1.msra.mxu0 0.0
  %1415 = vmatprep.subr.mxu0 0.0
  %1416 = vmatpush1.msra.mxu0 0.0
  %1417 = vmatprep.subr.mxu0 0.0
  %1418 = vmatpush1.msra.mxu0 0.0
  %1419 = vmatprep.subr.mxu0 0.0
  %1420 = vmatpush1.msra.mxu0 0.0
  %1421 = vmatprep.subr.mxu0 0.0
  %1422 = vmatpush1.msra.mxu0 0.0
  %1423 = vmatprep.subr.mxu0 0.0
  %1424 = vmatpush1.msra.mxu0 0.0
  %1425 = vmatprep.subr.mxu0 0.0
  %1426 = vmatpush1.msra.mxu0 0.0
  %1427 = vmatprep.subr.mxu0 0.0
  %1428 = vmatpush1.msra.mxu0 0.0
  %1429 = vmatprep.subr.mxu0 0.0
  %1430 = vmatpush1.msra.mxu0 0.0
  %1431 = vmatprep.subr.mxu0 0.0
  %1432 = vmatpush1.msra.mxu0 0.0
  %1433 = vmatprep.subr.mxu0 0.0
  %1434 = vmatpush1.msra.mxu0 0.0
  %1435 = vmatprep.subr.mxu0 0.0
  %1436 = vmatpush1.msra.mxu0 0.0
  %1437 = vmatprep.subr.mxu0 0.0
  %1438 = vmatpush1.msra.mxu0 0.0
  %1439 = vmatprep.mubr.f32.mxu0 0.0
  %1440 = vmatmul.mubr.f32.gmra.mrb[0].mxu0 %v1298
  %v1441 = vpop.f32.mrb[0].mxu0
  %v1442 = vadd.f32 0.0, %v1441
  %v1443 = vpop.f32.mrb[0].mxu0
  %v1444 = vadd.f32 0.0, %v1443
  %1445 = vdwg.mxu0
  %v1446 = vadd.f32 %v1300, %v1371
  %v1447 = vadd.f32 %v1301, %v1373
  %v1448 = vadd.f32 %v1302, %v1442
  %v1449 = vadd.f32 %v1303, %v1444
  %v1450 = vxor.u32 %v1446, 2147483648
  %v1451 = vmul.f32 %v1450, 1.442695
  %v1452 = vpow.pop %v1451
  %v1453 = vadd.f32 %v1452, 1.0
  %v1454 = vrcp.pop %v1453
  %v1455 = vmul.f32 1.0, %v1454
  %v1456 = vxor.u32 %v1447, 2147483648
  %v1457 = vmul.f32 %v1456, 1.442695
  %v1458 = vpow.pop %v1457
  %v1459 = vadd.f32 %v1458, 1.0
  %v1460 = vrcp.pop %v1459
  %v1461 = vmul.f32 1.0, %v1460
  %v1462 = vtanh.pop %v1448
  %v1463 = vxor.u32 %v1449, 2147483648
  %v1464 = vmul.f32 %v1463, 1.442695
  %v1465 = vpow.pop %v1464
  %v1466 = vadd.f32 %v1465, 1.0
  %v1467 = vrcp.pop %v1466
  %v1468 = vmul.f32 1.0, %v1467
  %v1469 = vmul.f32 %v1461, %v1296
  %v1470 = vmul.f32 %v1455, %v1462
  %v1471 = vadd.f32 %v1469, %v1470
  %v1472 = vtanh.pop %v1471
  %v1473 = vmul.f32 %v1468, %v1472
  %1474 = vst [vmem:[%s2] sm:$0xff] %v1473
  // Predicated region
  $region10: #{lstm_model_forward.1} parent=0 // pred_check
    _
  $region11: #{lstm_model_forward.1} parent=0 // pred_check_branch
    %1476 = sbr.rel (0) target = $region13
  $region12: #{lstm_model_forward.1} parent=0 // pred_region
    _
  $region13: #{lstm_model_forward.1} parent=0 // pred_fallthru
    _
  // Predicated region
  $region14: #{lstm_model_forward.1} parent=0 // pred_check
    _
  $region15: #{lstm_model_forward.1} parent=0 // pred_check_branch
    %1478 = sbr.rel (0) target = $region17
  $region16: #{lstm_model_forward.1} parent=0 // pred_region
    _
  $region17: #{lstm_model_forward.1} parent=0 // pred_fallthru
    _

</llo_original>
